<compile_context>
chip_gen: v5e
topology: v5e:2x2
jax: 0.10.0
libtpu: 0.0.40
codegen_flags: <defaults>
</compile_context>

<pallas_src>
import functools

import numpy as np
import jax
import jax.numpy as jnp
from jax.experimental import pallas as pl
from jax.experimental.pallas import tpu as pltpu


def _leaky(v):
    # nn.LeakyReLU(negative_slope=0.2)
    return jnp.where(v >= 0, v, 0.2 * v)


def _round_up(a, m):
    return (a + m - 1) // m * m


# ---------------------------------------------------------------------------
# Stage 1: position-wise feed-forward (stack2double + double2simple + W_ih).
# Operates on a (tile, C) block of time-major rows (row = t * B_pad + b).
# ---------------------------------------------------------------------------
def _ffw_kernel(x_ref, wb_ref, w1x0_ref, w2bd_ref, b2_ref, cv1_ref, cb1_ref,
                cv2_ref, cb2_ref, wih_ref, bih_ref, gi_ref):
    f32, bf16 = jnp.float32, jnp.bfloat16
    rows = x_ref.shape[0]
    bp, ce = wb_ref.shape
    reps = rows // bp

    # Linear(2, E) per channel: voltage half via block matmul; connection-weight
    # half (wb = w @ W1[1] + b1, identical for every tile) is hoisted to the
    # wrapper and only broadcast-added here (never materialized at (T*B, C*E)).
    xw = jnp.dot(x_ref[...], w1x0_ref[...], preferred_element_type=f32)
    h1 = _leaky(xw.reshape(reps, bp, ce) + wb_ref[...][None])
    h1 = h1.reshape(rows, ce).astype(bf16)
    # Linear(E, E) per channel (block-diagonal), then the two grouped 1x1 convs.
    # TODO(synk): for very large in_channel*embed_dim, replace the dense
    # block-structured W2BD/CV1 with per-group batched dot_general (C x / E x
    # fewer FLOPs and O((C*E)^2) less VMEM).
    h2 = _leaky(jnp.dot(h1, w2bd_ref[...], preferred_element_type=f32)
                + b2_ref[...]).astype(bf16)
    y1 = _leaky(jnp.dot(h2, cv1_ref[...], preferred_element_type=f32)
                + cb1_ref[...]).astype(bf16)
    sp = _leaky(jnp.dot(y1, cv2_ref[...], preferred_element_type=f32)
                + cb2_ref[...]).astype(bf16)
    # Input-side GRU matmul hoisted out of the recurrence (gate order [r|z|n]).
    gi_ref[...] = (jnp.dot(sp, wih_ref[...], preferred_element_type=f32)
                   + bih_ref[...]).astype(gi_ref.dtype)


# ---------------------------------------------------------------------------
# Stage 2: GRU recurrence (h carried in VMEM across time chunks, per batch
# tile) + after_rnn head applied chunk-wide.
# ---------------------------------------------------------------------------
def _rnn_kernel(h0_ref, gi_ref, whh_ref, bhh_ref, wa1_ref, ba1_ref,
                wa2_ref, ba2_ref, out_ref, hid_ref, hcar_ref, hs_ref,
                *, t_total):
    f32, bf16 = jnp.float32, jnp.bfloat16
    tc, bt, e3 = gi_ref.shape
    e = e3 // 3
    ci = pl.program_id(1)

    @pl.when(ci == 0)
    def _init():
        hcar_ref[...] = h0_ref[...]

    whh = whh_ref[...]                       # bf16 (E, 3E)
    bhh = bhh_ref[...]                       # f32  (1, 3E)

    def step(tt, h):
        gi = gi_ref[tt].astype(f32)                                   # (bt, 3E)
        gh = jnp.dot(h.astype(bf16), whh, preferred_element_type=f32) + bhh
        rz = jax.nn.sigmoid(gi[:, :2 * e] + gh[:, :2 * e])            # fused r|z
        r, z = rz[:, :e], rz[:, e:]
        n = jnp.tanh(gi[:, 2 * e:] + r * gh[:, 2 * e:])
        h_new = (1.0 - z) * n + z * h
        hs_ref[tt] = h_new
        return h_new

    h_last = jax.lax.fori_loop(0, tc, step, hcar_ref[...], unroll=4)
    hcar_ref[...] = h_last

    # The GRU's returned hidden is h at the last *valid* time step; snapshot it
    # once per chunk (only fires in the final chunk) instead of masking every
    # step against the zero-padded tail.
    last_t = t_total - 1 - ci * tc
    in_chunk = jnp.logical_and(last_t >= 0, last_t < tc)
    idx = jnp.clip(last_t, 0, tc - 1)

    @pl.when(in_chunk)
    def _snap():
        hid_ref[...] = hs_ref[idx]

    # after_rnn head over the whole chunk: two wide bf16 matmuls, one store.
    hs = hs_ref[...].reshape(tc * bt, e).astype(bf16)
    a1 = _leaky(jnp.dot(hs, wa1_ref[...], preferred_element_type=f32)
                + ba1_ref[...])
    a2 = jnp.dot(a1.astype(bf16), wa2_ref[...], preferred_element_type=f32) \
        + ba2_ref[...]
    out_ref[...] = a2.reshape(tc, bt, -1)


# ---------------------------------------------------------------------------
# Parameters / structured-weight construction (plain-JAX glue, all tiny).
# ---------------------------------------------------------------------------
def make_params(key, in_channel, out_channel):
    """Deterministic synthetic parameters with the same shapes as GRUBig.__init__."""
    E = int(min(int(np.exp2(np.floor(np.log2(in_channel)) + 1)), 64))
    EE = E * E
    C = in_channel
    ks = jax.random.split(key, 16)
    s = 0.2
    p = dict(
        # stack2double: Linear(2,E), Linear(E,E) (weights stored transposed: in x out)
        W1=s * jax.random.normal(ks[0], (2, E), jnp.float32),
        b1=s * jax.random.normal(ks[1], (E,), jnp.float32),
        W2=s * jax.random.normal(ks[2], (E, E), jnp.float32),
        b2=s * jax.random.normal(ks[3], (E,), jnp.float32),
        # double2simple: Conv1d(C*E, E*E, k=1, groups=E), Conv1d(E*E, E, k=1, groups=E)
        conv1_w=s * jax.random.normal(ks[4], (EE, C), jnp.float32),   # (out, in/group)
        conv1_b=s * jax.random.normal(ks[5], (EE,), jnp.float32),
        conv2_w=s * jax.random.normal(ks[6], (E, E), jnp.float32),    # (out, in/group)
        conv2_b=s * jax.random.normal(ks[7], (E,), jnp.float32),
        # GRU(E, E, 1): weight_ih/hh transposed, gate order [r | z | n]
        Wih=s * jax.random.normal(ks[8], (E, 3 * E), jnp.float32),
        Whh=s * jax.random.normal(ks[9], (E, 3 * E), jnp.float32),
        bih=s * jax.random.normal(ks[10], (3 * E,), jnp.float32),
        bhh=s * jax.random.normal(ks[11], (3 * E,), jnp.float32),
        # after_rnn: Linear(E,E), Linear(E,out)
        Wa1=s * jax.random.normal(ks[12], (E, E), jnp.float32),
        ba1=s * jax.random.normal(ks[13], (E,), jnp.float32),
        Wa2=s * jax.random.normal(ks[14], (E, out_channel), jnp.float32),
        ba2=s * jax.random.normal(ks[15], (out_channel,), jnp.float32),
    )
    return p, E


def _structured_weights(params, C, E):
    """Fold grouping + Fortran-order permutation into dense block matrices.

    Lane layout of the intermediate activations is [c*E + e] / [c*E + g] /
    [g*E + j], matching reshape_fortran + the grouped Conv1d channel order.
    """
    f32 = jnp.float32
    EE = E * E
    eye_c = jnp.eye(C, dtype=f32)
    W1X0 = jnp.kron(eye_c, params['W1'][0:1, :])          # (C, C*E)  voltage half
    W1X1 = jnp.kron(eye_c, params['W1'][1:2, :])          # (C, C*E)  conn-weight half
    b1r = jnp.tile(params['b1'], C)[None, :]              # (1, C*E)
    W2BD = jnp.kron(eye_c, params['W2'])                  # (C*E, C*E) block-diag
    b2r = jnp.tile(params['b2'], C)[None, :]
    # conv1 (groups=E): lanes [c*E+g] -> [g*E+j]
    r = jnp.arange(C * E)
    c_r, g_r = r // E, r % E
    o = jnp.arange(EE)
    g_o = o // E
    CV1 = params['conv1_w'].T[c_r, :] * (g_r[:, None] == g_o[None, :]).astype(f32)
    cb1 = params['conv1_b'][None, :]
    # conv2 (groups=E): lanes [g*E+j] -> [g]
    CV2 = (params['conv2_w'][g_o, o % E][:, None]
           * (g_o[:, None] == jnp.arange(E)[None, :]).astype(f32))
    cb2 = params['conv2_b'][None, :]
    return W1X0, W1X1, b1r, W2BD, b2r, CV1, cb1, CV2, cb2


# ---------------------------------------------------------------------------
# Public forward.
# ---------------------------------------------------------------------------
def gru_big_forward(input_volt, connection_weights, params, init=None):
    """input_volt (B, C, T), connection_weights (B, C) -> (B, out, T), (1, B, E)."""
    # TODO(synk): random_init=True path (torch.randn hidden) not reproduced; pass `init`.
    f32, bf16 = jnp.float32, jnp.bfloat16
    B, C, T = input_volt.shape
    E = params['W2'].shape[0]
    CE, EE = C * E, E * E
    out_ch = params['Wa2'].shape[1]
    OUT8 = _round_up(out_ch, 8)               # small lane-padded output (no 128 waste)

    B_pad = _round_up(B, 8)
    # v7x: shard the recurrence across the 2 TensorCores over batch tiles
    # (B_tile kept a multiple of 16 so bf16 gi blocks stay sublane-tile aligned).
    n_bt = 2 if (B_pad % 32 == 0) else 1
    B_tile = B_pad // n_bt

    # Stage-2 chunk length (time steps): long chunks amortize per-grid-step overhead.
    tc2 = min(256, _round_up(T, 8))
    T_pad = _round_up(T, tc2)
    R_pad = T_pad * B_pad
    n_chunks = T_pad // tc2

    # Generation-aware VMEM limit (v7x has 64 MiB/TC vs 128 MiB on v5e/v6e).
    try:
        vmem_cap = int(pltpu.get_tpu_info().vmem_capacity_bytes)
    except Exception:
        vmem_cap = 128 * 1024 * 1024
    vmem_limit = int(min(vmem_cap * 5 // 8, 80 * 1024 * 1024))

    # Stage-1 row-tile from a rough VMEM budget: bf16 weights (double-buffered)
    # plus bf16 intermediates / f32 accumulator per row.
    weight_bytes = 4 * (C * CE + CE * CE + CE * EE + EE * E + 3 * E * E
                        + 2 * B_pad * CE)
    row_bytes = 4 * C + 8 * CE + 6 * CE + 2 * EE + 2 * E + 12 * E
    budget = max(1 << 20, vmem_limit - weight_bytes - (4 << 20))
    step = 2 if B_pad % 16 else 1             # keep bf16 blocks 16-sublane aligned
    tc1 = max(step, min(tc2, budget // (row_bytes * B_pad)))
    tc1 = (tc1 // step) * step
    while tc2 % tc1:
        tc1 -= step
    tile1 = tc1 * B_pad

    # ---- input layout: time-major rows (row = t*B_pad + b), zero padded ----
    x_t = jnp.transpose(input_volt, (2, 0, 1)).astype(f32)            # (T, B, C)
    x_t = jnp.pad(x_t, ((0, T_pad - T), (0, B_pad - B), (0, 0)))
    x_rows = x_t.reshape(R_pad, C).astype(bf16)
    w_pad = jnp.pad(connection_weights.astype(f32), ((0, B_pad - B), (0, 0)))

    if init is None:
        h0 = jnp.zeros((B_pad, E), f32)
    else:
        h0 = jnp.pad(jnp.asarray(init, f32).reshape(B, E), ((0, B_pad - B), (0, 0)))

    (W1X0, W1X1, b1r, W2BD, b2r, CV1, cb1, CV2, cb2) = _structured_weights(params, C, E)
    # Connection-weight half of Linear(2,E) is time-invariant: hoist out of the kernel.
    WB = jnp.dot(w_pad, W1X1) + b1r                                    # (B_pad, C*E) f32

    Wa2p = jnp.zeros((E, OUT8), f32).at[:, :out_ch].set(params['Wa2'])
    ba2p = jnp.zeros((1, OUT8), f32).at[:, :out_ch].set(params['ba2'])
    row = lambda v: jnp.asarray(v, f32).reshape(1, -1)

    def cparams(sem):
        return pltpu.CompilerParams(dimension_semantics=sem,
                                    vmem_limit_bytes=vmem_limit)

    def run(single_buffer_weights):
        # Constant weights never change across grid steps: single-buffer them
        # when the runtime supports it (pure VMEM saving, no perf downside).
        pm = ({'pipeline_mode': pl.Buffered(buffer_count=1)}
              if single_buffer_weights else {})
        c1 = lambda shape: pl.BlockSpec(shape, lambda i: (0,) * len(shape), **pm)
        c2 = lambda shape: pl.BlockSpec(shape, lambda bi, ci: (0,) * len(shape), **pm)

        # ---- stage 1: streaming feed-forward, pipelined over row tiles ----
        gi = pl.pallas_call(
            _ffw_kernel,
            out_shape=jax.ShapeDtypeStruct((R_pad, 3 * E), bf16),
            grid=(R_pad // tile1,),
            in_specs=[
                pl.BlockSpec((tile1, C), lambda i: (i, 0)),     # x rows
                c1((B_pad, CE)),                                # hoisted wb
                c1((C, CE)), c1((CE, CE)), c1((1, CE)),
                c1((CE, EE)), c1((1, EE)),
                c1((EE, E)), c1((1, E)),
                c1((E, 3 * E)), c1((1, 3 * E)),
            ],
            out_specs=pl.BlockSpec((tile1, 3 * E), lambda i: (i, 0)),
            compiler_params=cparams(("parallel",)),
        )(x_rows, WB,
          W1X0.astype(bf16), W2BD.astype(bf16), b2r,
          CV1.astype(bf16), cb1, CV2.astype(bf16), cb2,
          params['Wih'].astype(bf16), row(params['bih']))

        gi3 = gi.reshape(T_pad, B_pad, 3 * E)   # row-major: free re-view

        # ---- stage 2: GRU recurrence + after_rnn (batch-parallel, time-sequential) ----
        out_pad, hid_pad = pl.pallas_call(
            functools.partial(_rnn_kernel, t_total=T),
            out_shape=(jax.ShapeDtypeStruct((T_pad, B_pad, OUT8), f32),
                       jax.ShapeDtypeStruct((B_pad, E), f32)),
            grid=(n_bt, n_chunks),
            in_specs=[
                pl.BlockSpec((B_tile, E), lambda bi, ci: (bi, 0)),            # h0
                pl.BlockSpec((tc2, B_tile, 3 * E), lambda bi, ci: (ci, bi, 0)),
                c2((E, 3 * E)), c2((1, 3 * E)),                               # Whh, bhh
                c2((E, E)), c2((1, E)),                                       # Wa1, ba1
                c2((E, OUT8)), c2((1, OUT8)),                                 # Wa2, ba2
            ],
            out_specs=(pl.BlockSpec((tc2, B_tile, OUT8), lambda bi, ci: (ci, bi, 0)),
                       pl.BlockSpec((B_tile, E), lambda bi, ci: (bi, 0))),
            scratch_shapes=[pltpu.VMEM((B_tile, E), f32),        # h carried across chunks
                            pltpu.VMEM((tc2, B_tile, E), f32)],  # h history for the chunk
            compiler_params=cparams(("parallel", "arbitrary")),
        )(h0, gi3,
          params['Whh'].astype(bf16), row(params['bhh']),
          params['Wa1'].astype(bf16), row(params['ba1']),
          Wa2p.astype(bf16), ba2p)
        return out_pad, hid_pad

    try:
        out_pad, hid_pad = run(True)
    except Exception:
        # pipeline_mode not supported on this JAX version: default double buffering.
        out_pad, hid_pad = run(False)

    # Slice the tiny useful slab before the transpose (avoids re-touching padding).
    out = jnp.transpose(out_pad[:T, :B, :out_ch], (1, 2, 0))     # (B, out, T)
    hidden = hid_pad[:B][None, :, :]                             # (1, B, E)
    return out, hidden


# ---------------------------------------------------------------------------
# Pure-JAX reference (verification only).
# ---------------------------------------------------------------------------
def gru_big_reference(input_volt, connection_weights, params, init=None):
    B, C, T = input_volt.shape
    E = params['W2'].shape[0]
    iv = jnp.transpose(input_volt, (2, 0, 1))                     # (T, B, C)
    cw = jnp.broadcast_to(connection_weights[None], (T, B, C))
    syn = jnp.stack([iv, cw], axis=-1)                            # (T, B, C, 2)
    h1 = _leaky(syn @ params['W1'] + params['b1'])
    h2 = _leaky(h1 @ params['W2'] + params['b2'])                 # (T, B, C, E)
    # reshape_fortran((T,B,C,E) -> (T,B,E*C)): v[..., c + C*e] = h2[..., c, e]
    v = jnp.transpose(h2, (0, 1, 3, 2)).reshape(T, B, E * C)
    y1 = jnp.zeros((T, B, E * E), jnp.float32)
    for g in range(E):
        vg = v[..., g * C:(g + 1) * C]
        y1 = y1.at[..., g * E:(g + 1) * E].set(vg @ params['conv1_w'][g * E:(g + 1) * E].T)
    y1 = _leaky(y1 + params['conv1_b'])
    simple = jnp.zeros((T, B, E), jnp.float32)
    for g in range(E):
        simple = simple.at[..., g].set(
            jnp.sum(y1[..., g * E:(g + 1) * E] * params['conv2_w'][g], axis=-1))
    simple = _leaky(simple + params['conv2_b'])
    h = jnp.zeros((B, E), jnp.float32) if init is None else jnp.asarray(init).reshape(B, E)
    outs = []
    for t in range(T):
        gi = simple[t] @ params['Wih'] + params['bih']
        gh = h @ params['Whh'] + params['bhh']
        r = jax.nn.sigmoid(gi[:, :E] + gh[:, :E])
        z = jax.nn.sigmoid(gi[:, E:2 * E] + gh[:, E:2 * E])
        n = jnp.tanh(gi[:, 2 * E:] + r * gh[:, 2 * E:])
        h = (1.0 - z) * n + z * h
        outs.append(h)
    rnn_out = jnp.stack(outs)                                      # (T, B, E)
    a1 = _leaky(rnn_out @ params['Wa1'] + params['ba1'])
    a2 = a1 @ params['Wa2'] + params['ba2']
    return jnp.transpose(a2, (1, 2, 0)), h[None]


if __name__ == "__main__":
    B, C, T, OUT = 2, 4, 8, 3          # in_channel=4 -> embed_dim=8
    key = jax.random.PRNGKey(0)
    kp, kx, kw = jax.random.split(key, 3)
    params, E = make_params(kp, C, OUT)

    input_volt = jax.random.normal(kx, (B, C, T), jnp.float32)
    connection_weights = jax.random.normal(kw, (B, C), jnp.float32)

    out, hidden = gru_big_forward(input_volt, connection_weights, params)
    jax.block_until_ready((out, hidden))

    ref_out, ref_hidden = gru_big_reference(input_volt, connection_weights, params)
    assert out.shape == (B, OUT, T) and hidden.shape == (1, B, E)
    np.testing.assert_allclose(np.asarray(out), np.asarray(ref_out), atol=3e-2, rtol=3e-2)
    np.testing.assert_allclose(np.asarray(hidden), np.asarray(ref_hidden), atol=3e-2, rtol=3e-2)
    print("KERNEL_OK")
</pallas_src>

<mosaic_0001>
module attributes {stable_mosaic.version = 11 : i64} {
  func.func @_ffw_kernel(%arg0: i32, %arg1: memref<64x4xbf16, #tpu.memory_space<vmem>>, %arg2: memref<8x32xf32, #tpu.memory_space<vmem>>, %arg3: memref<4x32xbf16, #tpu.memory_space<vmem>>, %arg4: memref<32x32xbf16, #tpu.memory_space<vmem>>, %arg5: memref<1x32xf32, #tpu.memory_space<vmem>>, %arg6: memref<32x64xbf16, #tpu.memory_space<vmem>>, %arg7: memref<1x64xf32, #tpu.memory_space<vmem>>, %arg8: memref<64x8xbf16, #tpu.memory_space<vmem>>, %arg9: memref<1x8xf32, #tpu.memory_space<vmem>>, %arg10: memref<8x24xbf16, #tpu.memory_space<vmem>>, %arg11: memref<1x24xf32, #tpu.memory_space<vmem>>, %arg12: memref<64x24xbf16, #tpu.memory_space<vmem>>) attributes {dimension_semantics = [#tpu.dimension_semantics<parallel>], iteration_bounds = array<i64: 1>, scalar_prefetch = 0 : i64, scratch_operands = 0 : i64, tpu.core_type = #tpu.core_type<tc>, window_params = [{transform_indices = @transform_0, window_bounds = array<i64: 64, 4>}, {pipeline_mode = #tpu.pipeline_mode<synchronous>, transform_indices = @transform_1, window_bounds = array<i64: 8, 32>}, {pipeline_mode = #tpu.pipeline_mode<synchronous>, transform_indices = @transform_2, window_bounds = array<i64: 4, 32>}, {pipeline_mode = #tpu.pipeline_mode<synchronous>, transform_indices = @transform_3, window_bounds = array<i64: 32, 32>}, {pipeline_mode = #tpu.pipeline_mode<synchronous>, transform_indices = @transform_4, window_bounds = array<i64: 1, 32>}, {pipeline_mode = #tpu.pipeline_mode<synchronous>, transform_indices = @transform_5, window_bounds = array<i64: 32, 64>}, {pipeline_mode = #tpu.pipeline_mode<synchronous>, transform_indices = @transform_6, window_bounds = array<i64: 1, 64>}, {pipeline_mode = #tpu.pipeline_mode<synchronous>, transform_indices = @transform_7, window_bounds = array<i64: 64, 8>}, {pipeline_mode = #tpu.pipeline_mode<synchronous>, transform_indices = @transform_8, window_bounds = array<i64: 1, 8>}, {pipeline_mode = #tpu.pipeline_mode<synchronous>, transform_indices = @transform_9, window_bounds = array<i64: 8, 24>}, {pipeline_mode = #tpu.pipeline_mode<synchronous>, transform_indices = @transform_10, window_bounds = array<i64: 1, 24>}, {transform_indices = @transform_11, window_bounds = array<i64: 64, 24>}]} {
    %c0 = arith.constant 0 : index
    %c0_0 = arith.constant 0 : index
    %0 = vector.load %arg1[%c0, %c0_0] : memref<64x4xbf16, #tpu.memory_space<vmem>>, vector<64x4xbf16>
    %c0_1 = arith.constant 0 : index
    %c0_2 = arith.constant 0 : index
    %1 = vector.load %arg3[%c0_1, %c0_2] : memref<4x32xbf16, #tpu.memory_space<vmem>>, vector<4x32xbf16>
    %cst = arith.constant dense<0.000000e+00> : vector<64x32xf32>
    %2 = tpu.matmul %0, %1, %cst {dimension_numbers = #tpu.dot_dimension_numbers<[1], [0], [0], [1], [0, 0, 1, 1], [], []>} : vector<64x4xbf16>, vector<4x32xbf16>, vector<64x32xf32> -> vector<64x32xf32>
    %3 = vector.shape_cast %2 : vector<64x32xf32> to vector<8x8x32xf32>
    %c0_3 = arith.constant 0 : index
    %c0_4 = arith.constant 0 : index
    %4 = vector.load %arg2[%c0_3, %c0_4] : memref<8x32xf32, #tpu.memory_space<vmem>>, vector<8x32xf32>
    %5 = vector.shape_cast %4 : vector<8x32xf32> to vector<1x8x32xf32>
    %6 = vector.broadcast %5 : vector<1x8x32xf32> to vector<8x8x32xf32>
    %7 = arith.addf %3, %6 : vector<8x8x32xf32>
    %cst_5 = arith.constant 0.000000e+00 : f32
    %8 = vector.broadcast %cst_5 : f32 to vector<8x8x32xf32>
    %9 = arith.cmpf oge, %7, %8 : vector<8x8x32xf32>
    %cst_6 = arith.constant 2.000000e-01 : f32
    %10 = vector.broadcast %cst_6 : f32 to vector<8x8x32xf32>
    %11 = arith.mulf %10, %7 : vector<8x8x32xf32>
    %12 = arith.select %9, %7, %11 : vector<8x8x32xi1>, vector<8x8x32xf32>
    %13 = vector.shape_cast %12 : vector<8x8x32xf32> to vector<64x32xf32>
    %14 = arith.truncf %13 : vector<64x32xf32> to vector<64x32xbf16>
    %c0_7 = arith.constant 0 : index
    %c0_8 = arith.constant 0 : index
    %15 = vector.load %arg4[%c0_7, %c0_8] : memref<32x32xbf16, #tpu.memory_space<vmem>>, vector<32x32xbf16>
    %cst_9 = arith.constant dense<0.000000e+00> : vector<64x32xf32>
    %16 = tpu.matmul %14, %15, %cst_9 {dimension_numbers = #tpu.dot_dimension_numbers<[1], [0], [0], [1], [0, 0, 1, 1], [], []>} : vector<64x32xbf16>, vector<32x32xbf16>, vector<64x32xf32> -> vector<64x32xf32>
    %c0_10 = arith.constant 0 : index
    %c0_11 = arith.constant 0 : index
    %17 = vector.load %arg5[%c0_10, %c0_11] : memref<1x32xf32, #tpu.memory_space<vmem>>, vector<1x32xf32>
    %18 = vector.broadcast %17 : vector<1x32xf32> to vector<64x32xf32>
    %19 = arith.addf %16, %18 : vector<64x32xf32>
    %cst_12 = arith.constant 0.000000e+00 : f32
    %20 = vector.broadcast %cst_12 : f32 to vector<64x32xf32>
    %21 = arith.cmpf oge, %19, %20 : vector<64x32xf32>
    %cst_13 = arith.constant 2.000000e-01 : f32
    %22 = vector.broadcast %cst_13 : f32 to vector<64x32xf32>
    %23 = arith.mulf %22, %19 : vector<64x32xf32>
    %24 = arith.select %21, %19, %23 : vector<64x32xi1>, vector<64x32xf32>
    %25 = arith.truncf %24 : vector<64x32xf32> to vector<64x32xbf16>
    %c0_14 = arith.constant 0 : index
    %c0_15 = arith.constant 0 : index
    %26 = vector.load %arg6[%c0_14, %c0_15] : memref<32x64xbf16, #tpu.memory_space<vmem>>, vector<32x64xbf16>
    %cst_16 = arith.constant dense<0.000000e+00> : vector<64x64xf32>
    %27 = tpu.matmul %25, %26, %cst_16 {dimension_numbers = #tpu.dot_dimension_numbers<[1], [0], [0], [1], [0, 0, 1, 1], [], []>} : vector<64x32xbf16>, vector<32x64xbf16>, vector<64x64xf32> -> vector<64x64xf32>
    %c0_17 = arith.constant 0 : index
    %c0_18 = arith.constant 0 : index
    %28 = vector.load %arg7[%c0_17, %c0_18] : memref<1x64xf32, #tpu.memory_space<vmem>>, vector<1x64xf32>
    %29 = vector.broadcast %28 : vector<1x64xf32> to vector<64x64xf32>
    %30 = arith.addf %27, %29 : vector<64x64xf32>
    %cst_19 = arith.constant 0.000000e+00 : f32
    %31 = vector.broadcast %cst_19 : f32 to vector<64x64xf32>
    %32 = arith.cmpf oge, %30, %31 : vector<64x64xf32>
    %cst_20 = arith.constant 2.000000e-01 : f32
    %33 = vector.broadcast %cst_20 : f32 to vector<64x64xf32>
    %34 = arith.mulf %33, %30 : vector<64x64xf32>
    %35 = arith.select %32, %30, %34 : vector<64x64xi1>, vector<64x64xf32>
    %36 = arith.truncf %35 : vector<64x64xf32> to vector<64x64xbf16>
    %c0_21 = arith.constant 0 : index
    %c0_22 = arith.constant 0 : index
    %37 = vector.load %arg8[%c0_21, %c0_22] : memref<64x8xbf16, #tpu.memory_space<vmem>>, vector<64x8xbf16>
    %cst_23 = arith.constant dense<0.000000e+00> : vector<64x8xf32>
    %38 = tpu.matmul %36, %37, %cst_23 {dimension_numbers = #tpu.dot_dimension_numbers<[1], [0], [0], [1], [0, 0, 1, 1], [], []>} : vector<64x64xbf16>, vector<64x8xbf16>, vector<64x8xf32> -> vector<64x8xf32>
    %c0_24 = arith.constant 0 : index
    %c0_25 = arith.constant 0 : index
    %39 = vector.load %arg9[%c0_24, %c0_25] : memref<1x8xf32, #tpu.memory_space<vmem>>, vector<1x8xf32>
    %40 = vector.broadcast %39 : vector<1x8xf32> to vector<64x8xf32>
    %41 = arith.addf %38, %40 : vector<64x8xf32>
    %cst_26 = arith.constant 0.000000e+00 : f32
    %42 = vector.broadcast %cst_26 : f32 to vector<64x8xf32>
    %43 = arith.cmpf oge, %41, %42 : vector<64x8xf32>
    %cst_27 = arith.constant 2.000000e-01 : f32
    %44 = vector.broadcast %cst_27 : f32 to vector<64x8xf32>
    %45 = arith.mulf %44, %41 : vector<64x8xf32>
    %46 = arith.select %43, %41, %45 : vector<64x8xi1>, vector<64x8xf32>
    %47 = arith.truncf %46 : vector<64x8xf32> to vector<64x8xbf16>
    %c0_28 = arith.constant 0 : index
    %c0_29 = arith.constant 0 : index
    %48 = vector.load %arg10[%c0_28, %c0_29] : memref<8x24xbf16, #tpu.memory_space<vmem>>, vector<8x24xbf16>
    %cst_30 = arith.constant dense<0.000000e+00> : vector<64x24xf32>
    %49 = tpu.matmul %47, %48, %cst_30 {dimension_numbers = #tpu.dot_dimension_numbers<[1], [0], [0], [1], [0, 0, 1, 1], [], []>} : vector<64x8xbf16>, vector<8x24xbf16>, vector<64x24xf32> -> vector<64x24xf32>
    %c0_31 = arith.constant 0 : index
    %c0_32 = arith.constant 0 : index
    %50 = vector.load %arg11[%c0_31, %c0_32] : memref<1x24xf32, #tpu.memory_space<vmem>>, vector<1x24xf32>
    %51 = vector.broadcast %50 : vector<1x24xf32> to vector<64x24xf32>
    %52 = arith.addf %49, %51 : vector<64x24xf32>
    %53 = arith.truncf %52 : vector<64x24xf32> to vector<64x24xbf16>
    %c0_33 = arith.constant 0 : index
    %c0_34 = arith.constant 0 : index
    %54 = vector.load %arg12[%c0_33, %c0_34] : memref<64x24xbf16, #tpu.memory_space<vmem>>, vector<64x24xbf16>
    tpu.vector_store %arg12[%c0_33, %c0_34], %53 {strides = array<i32>} : memref<64x24xbf16, #tpu.memory_space<vmem>>, vector<64x24xbf16>,
    return
  }
  func.func @transform_0(%arg0: i32) -> (i32, i32) {
    %c0_i32 = arith.constant 0 : i32
    %c0_i32_0 = arith.constant 0 : i32
    return %arg0, %c0_i32 : i32, i32
  }
  func.func @transform_1(%arg0: i32) -> (i32, i32) {
    %c0_i32 = arith.constant 0 : i32
    %c0_i32_0 = arith.constant 0 : i32
    %c0_i32_1 = arith.constant 0 : i32
    return %c0_i32, %c0_i32_0 : i32, i32
  }
  func.func @transform_2(%arg0: i32) -> (i32, i32) {
    %c0_i32 = arith.constant 0 : i32
    %c0_i32_0 = arith.constant 0 : i32
    %c0_i32_1 = arith.constant 0 : i32
    return %c0_i32, %c0_i32_0 : i32, i32
  }
  func.func @transform_3(%arg0: i32) -> (i32, i32) {
    %c0_i32 = arith.constant 0 : i32
    %c0_i32_0 = arith.constant 0 : i32
    %c0_i32_1 = arith.constant 0 : i32
    return %c0_i32, %c0_i32_0 : i32, i32
  }
  func.func @transform_4(%arg0: i32) -> (i32, i32) {
    %c0_i32 = arith.constant 0 : i32
    %c0_i32_0 = arith.constant 0 : i32
    %c0_i32_1 = arith.constant 0 : i32
    return %c0_i32, %c0_i32_0 : i32, i32
  }
  func.func @transform_5(%arg0: i32) -> (i32, i32) {
    %c0_i32 = arith.constant 0 : i32
    %c0_i32_0 = arith.constant 0 : i32
    %c0_i32_1 = arith.constant 0 : i32
    return %c0_i32, %c0_i32_0 : i32, i32
  }
  func.func @transform_6(%arg0: i32) -> (i32, i32) {
    %c0_i32 = arith.constant 0 : i32
    %c0_i32_0 = arith.constant 0 : i32
    %c0_i32_1 = arith.constant 0 : i32
    return %c0_i32, %c0_i32_0 : i32, i32
  }
  func.func @transform_7(%arg0: i32) -> (i32, i32) {
    %c0_i32 = arith.constant 0 : i32
    %c0_i32_0 = arith.constant 0 : i32
    %c0_i32_1 = arith.constant 0 : i32
    return %c0_i32, %c0_i32_0 : i32, i32
  }
  func.func @transform_8(%arg0: i32) -> (i32, i32) {
    %c0_i32 = arith.constant 0 : i32
    %c0_i32_0 = arith.constant 0 : i32
    %c0_i32_1 = arith.constant 0 : i32
    return %c0_i32, %c0_i32_0 : i32, i32
  }
  func.func @transform_9(%arg0: i32) -> (i32, i32) {
    %c0_i32 = arith.constant 0 : i32
    %c0_i32_0 = arith.constant 0 : i32
    %c0_i32_1 = arith.constant 0 : i32
    return %c0_i32, %c0_i32_0 : i32, i32
  }
  func.func @transform_10(%arg0: i32) -> (i32, i32) {
    %c0_i32 = arith.constant 0 : i32
    %c0_i32_0 = arith.constant 0 : i32
    %c0_i32_1 = arith.constant 0 : i32
    return %c0_i32, %c0_i32_0 : i32, i32
  }
  func.func @transform_11(%arg0: i32) -> (i32, i32) {
    %c0_i32 = arith.constant 0 : i32
    %c0_i32_0 = arith.constant 0 : i32
    return %arg0, %c0_i32 : i32, i32
  }
}

module attributes {stable_mosaic.version = 11 : i64} {
  func.func @_ffw_kernel(%arg0: i32, %arg1: memref<64x4xbf16, #tpu.memory_space<vmem>>, %arg2: memref<8x32xf32, #tpu.memory_space<vmem>>, %arg3: memref<4x32xbf16, #tpu.memory_space<vmem>>, %arg4: memref<32x32xbf16, #tpu.memory_space<vmem>>, %arg5: memref<1x32xf32, #tpu.memory_space<vmem>>, %arg6: memref<32x64xbf16, #tpu.memory_space<vmem>>, %arg7: memref<1x64xf32, #tpu.memory_space<vmem>>, %arg8: memref<64x8xbf16, #tpu.memory_space<vmem>>, %arg9: memref<1x8xf32, #tpu.memory_space<vmem>>, %arg10: memref<8x24xbf16, #tpu.memory_space<vmem>>, %arg11: memref<1x24xf32, #tpu.memory_space<vmem>>, %arg12: memref<64x24xbf16, #tpu.memory_space<vmem>>) attributes {dimension_semantics = [#tpu.dimension_semantics<parallel>], iteration_bounds = array<i64: 1>, scalar_prefetch = 0 : i64, scratch_operands = 0 : i64, tpu.core_type = #tpu.core_type<tc>, window_params = [{transform_indices = @transform_0, window_bounds = array<i64: 64, 4>}, {pipeline_mode = #tpu.pipeline_mode<synchronous>, transform_indices = @transform_1, window_bounds = array<i64: 8, 32>}, {pipeline_mode = #tpu.pipeline_mode<synchronous>, transform_indices = @transform_2, window_bounds = array<i64: 4, 32>}, {pipeline_mode = #tpu.pipeline_mode<synchronous>, transform_indices = @transform_3, window_bounds = array<i64: 32, 32>}, {pipeline_mode = #tpu.pipeline_mode<synchronous>, transform_indices = @transform_4, window_bounds = array<i64: 1, 32>}, {pipeline_mode = #tpu.pipeline_mode<synchronous>, transform_indices = @transform_5, window_bounds = array<i64: 32, 64>}, {pipeline_mode = #tpu.pipeline_mode<synchronous>, transform_indices = @transform_6, window_bounds = array<i64: 1, 64>}, {pipeline_mode = #tpu.pipeline_mode<synchronous>, transform_indices = @transform_7, window_bounds = array<i64: 64, 8>}, {pipeline_mode = #tpu.pipeline_mode<synchronous>, transform_indices = @transform_8, window_bounds = array<i64: 1, 8>}, {pipeline_mode = #tpu.pipeline_mode<synchronous>, transform_indices = @transform_9, window_bounds = array<i64: 8, 24>}, {pipeline_mode = #tpu.pipeline_mode<synchronous>, transform_indices = @transform_10, window_bounds = array<i64: 1, 24>}, {transform_indices = @transform_11, window_bounds = array<i64: 64, 24>}]} {
    %c0 = arith.constant 0 : index
    %c0_0 = arith.constant 0 : index
    %0 = vector.load %arg1[%c0, %c0_0] : memref<64x4xbf16, #tpu.memory_space<vmem>>, vector<64x4xbf16>
    %c0_1 = arith.constant 0 : index
    %c0_2 = arith.constant 0 : index
    %1 = vector.load %arg3[%c0_1, %c0_2] : memref<4x32xbf16, #tpu.memory_space<vmem>>, vector<4x32xbf16>
    %cst = arith.constant dense<0.000000e+00> : vector<64x32xf32>
    %2 = tpu.matmul %0, %1, %cst {dimension_numbers = #tpu.dot_dimension_numbers<[1], [0], [0], [1], [0, 0, 1, 1], [], []>} : vector<64x4xbf16>, vector<4x32xbf16>, vector<64x32xf32> -> vector<64x32xf32>
    %3 = vector.shape_cast %2 : vector<64x32xf32> to vector<8x8x32xf32>
    %c0_3 = arith.constant 0 : index
    %c0_4 = arith.constant 0 : index
    %4 = vector.load %arg2[%c0_3, %c0_4] : memref<8x32xf32, #tpu.memory_space<vmem>>, vector<8x32xf32>
    %5 = vector.shape_cast %4 : vector<8x32xf32> to vector<1x8x32xf32>
    %6 = vector.broadcast %5 : vector<1x8x32xf32> to vector<8x8x32xf32>
    %7 = arith.addf %3, %6 : vector<8x8x32xf32>
    %cst_5 = arith.constant 0.000000e+00 : f32
    %8 = vector.broadcast %cst_5 : f32 to vector<8x8x32xf32>
    %9 = arith.cmpf oge, %7, %8 : vector<8x8x32xf32>
    %cst_6 = arith.constant 2.000000e-01 : f32
    %10 = vector.broadcast %cst_6 : f32 to vector<8x8x32xf32>
    %11 = arith.mulf %10, %7 : vector<8x8x32xf32>
    %12 = arith.select %9, %7, %11 : vector<8x8x32xi1>, vector<8x8x32xf32>
    %13 = vector.shape_cast %12 : vector<8x8x32xf32> to vector<64x32xf32>
    %14 = arith.truncf %13 : vector<64x32xf32> to vector<64x32xbf16>
    %c0_7 = arith.constant 0 : index
    %c0_8 = arith.constant 0 : index
    %15 = vector.load %arg4[%c0_7, %c0_8] : memref<32x32xbf16, #tpu.memory_space<vmem>>, vector<32x32xbf16>
    %cst_9 = arith.constant dense<0.000000e+00> : vector<64x32xf32>
    %16 = tpu.matmul %14, %15, %cst_9 {dimension_numbers = #tpu.dot_dimension_numbers<[1], [0], [0], [1], [0, 0, 1, 1], [], []>} : vector<64x32xbf16>, vector<32x32xbf16>, vector<64x32xf32> -> vector<64x32xf32>
    %c0_10 = arith.constant 0 : index
    %c0_11 = arith.constant 0 : index
    %17 = vector.load %arg5[%c0_10, %c0_11] : memref<1x32xf32, #tpu.memory_space<vmem>>, vector<1x32xf32>
    %18 = vector.broadcast %17 : vector<1x32xf32> to vector<64x32xf32>
    %19 = arith.addf %16, %18 : vector<64x32xf32>
    %cst_12 = arith.constant 0.000000e+00 : f32
    %20 = vector.broadcast %cst_12 : f32 to vector<64x32xf32>
    %21 = arith.cmpf oge, %19, %20 : vector<64x32xf32>
    %cst_13 = arith.constant 2.000000e-01 : f32
    %22 = vector.broadcast %cst_13 : f32 to vector<64x32xf32>
    %23 = arith.mulf %22, %19 : vector<64x32xf32>
    %24 = arith.select %21, %19, %23 : vector<64x32xi1>, vector<64x32xf32>
    %25 = arith.truncf %24 : vector<64x32xf32> to vector<64x32xbf16>
    %c0_14 = arith.constant 0 : index
    %c0_15 = arith.constant 0 : index
    %26 = vector.load %arg6[%c0_14, %c0_15] : memref<32x64xbf16, #tpu.memory_space<vmem>>, vector<32x64xbf16>
    %cst_16 = arith.constant dense<0.000000e+00> : vector<64x64xf32>
    %27 = tpu.matmul %25, %26, %cst_16 {dimension_numbers = #tpu.dot_dimension_numbers<[1], [0], [0], [1], [0, 0, 1, 1], [], []>} : vector<64x32xbf16>, vector<32x64xbf16>, vector<64x64xf32> -> vector<64x64xf32>
    %c0_17 = arith.constant 0 : index
    %c0_18 = arith.constant 0 : index
    %28 = vector.load %arg7[%c0_17, %c0_18] : memref<1x64xf32, #tpu.memory_space<vmem>>, vector<1x64xf32>
    %29 = vector.broadcast %28 : vector<1x64xf32> to vector<64x64xf32>
    %30 = arith.addf %27, %29 : vector<64x64xf32>
    %cst_19 = arith.constant 0.000000e+00 : f32
    %31 = vector.broadcast %cst_19 : f32 to vector<64x64xf32>
    %32 = arith.cmpf oge, %30, %31 : vector<64x64xf32>
    %cst_20 = arith.constant 2.000000e-01 : f32
    %33 = vector.broadcast %cst_20 : f32 to vector<64x64xf32>
    %34 = arith.mulf %33, %30 : vector<64x64xf32>
    %35 = arith.select %32, %30, %34 : vector<64x64xi1>, vector<64x64xf32>
    %36 = arith.truncf %35 : vector<64x64xf32> to vector<64x64xbf16>
    %c0_21 = arith.constant 0 : index
    %c0_22 = arith.constant 0 : index
    %37 = vector.load %arg8[%c0_21, %c0_22] : memref<64x8xbf16, #tpu.memory_space<vmem>>, vector<64x8xbf16>
    %cst_23 = arith.constant dense<0.000000e+00> : vector<64x8xf32>
    %38 = tpu.matmul %36, %37, %cst_23 {dimension_numbers = #tpu.dot_dimension_numbers<[1], [0], [0], [1], [0, 0, 1, 1], [], []>} : vector<64x64xbf16>, vector<64x8xbf16>, vector<64x8xf32> -> vector<64x8xf32>
    %c0_24 = arith.constant 0 : index
    %c0_25 = arith.constant 0 : index
    %39 = vector.load %arg9[%c0_24, %c0_25] : memref<1x8xf32, #tpu.memory_space<vmem>>, vector<1x8xf32>
    %40 = vector.broadcast %39 : vector<1x8xf32> to vector<64x8xf32>
    %41 = arith.addf %38, %40 : vector<64x8xf32>
    %cst_26 = arith.constant 0.000000e+00 : f32
    %42 = vector.broadcast %cst_26 : f32 to vector<64x8xf32>
    %43 = arith.cmpf oge, %41, %42 : vector<64x8xf32>
    %cst_27 = arith.constant 2.000000e-01 : f32
    %44 = vector.broadcast %cst_27 : f32 to vector<64x8xf32>
    %45 = arith.mulf %44, %41 : vector<64x8xf32>
    %46 = arith.select %43, %41, %45 : vector<64x8xi1>, vector<64x8xf32>
    %47 = arith.truncf %46 : vector<64x8xf32> to vector<64x8xbf16>
    %c0_28 = arith.constant 0 : index
    %c0_29 = arith.constant 0 : index
    %48 = vector.load %arg10[%c0_28, %c0_29] : memref<8x24xbf16, #tpu.memory_space<vmem>>, vector<8x24xbf16>
    %cst_30 = arith.constant dense<0.000000e+00> : vector<64x24xf32>
    %49 = tpu.matmul %47, %48, %cst_30 {dimension_numbers = #tpu.dot_dimension_numbers<[1], [0], [0], [1], [0, 0, 1, 1], [], []>} : vector<64x8xbf16>, vector<8x24xbf16>, vector<64x24xf32> -> vector<64x24xf32>
    %c0_31 = arith.constant 0 : index
    %c0_32 = arith.constant 0 : index
    %50 = vector.load %arg11[%c0_31, %c0_32] : memref<1x24xf32, #tpu.memory_space<vmem>>, vector<1x24xf32>
    %51 = vector.broadcast %50 : vector<1x24xf32> to vector<64x24xf32>
    %52 = arith.addf %49, %51 : vector<64x24xf32>
    %53 = arith.truncf %52 : vector<64x24xf32> to vector<64x24xbf16>
    %c0_33 = arith.constant 0 : index
    %c0_34 = arith.constant 0 : index
    %54 = vector.load %arg12[%c0_33, %c0_34] : memref<64x24xbf16, #tpu.memory_space<vmem>>, vector<64x24xbf16>
    tpu.vector_store %arg12[%c0_33, %c0_34], %53 {strides = array<i32>} : memref<64x24xbf16, #tpu.memory_space<vmem>>, vector<64x24xbf16>,
    return
  }
  func.func @transform_0(%arg0: i32) -> (i32, i32) {
    %c0_i32 = arith.constant 0 : i32
    %c0_i32_0 = arith.constant 0 : i32
    return %arg0, %c0_i32 : i32, i32
  }
  func.func @transform_1(%arg0: i32) -> (i32, i32) {
    %c0_i32 = arith.constant 0 : i32
    %c0_i32_0 = arith.constant 0 : i32
    %c0_i32_1 = arith.constant 0 : i32
    return %c0_i32, %c0_i32_0 : i32, i32
  }
  func.func @transform_2(%arg0: i32) -> (i32, i32) {
    %c0_i32 = arith.constant 0 : i32
    %c0_i32_0 = arith.constant 0 : i32
    %c0_i32_1 = arith.constant 0 : i32
    return %c0_i32, %c0_i32_0 : i32, i32
  }
  func.func @transform_3(%arg0: i32) -> (i32, i32) {
    %c0_i32 = arith.constant 0 : i32
    %c0_i32_0 = arith.constant 0 : i32
    %c0_i32_1 = arith.constant 0 : i32
    return %c0_i32, %c0_i32_0 : i32, i32
  }
  func.func @transform_4(%arg0: i32) -> (i32, i32) {
    %c0_i32 = arith.constant 0 : i32
    %c0_i32_0 = arith.constant 0 : i32
    %c0_i32_1 = arith.constant 0 : i32
    return %c0_i32, %c0_i32_0 : i32, i32
  }
  func.func @transform_5(%arg0: i32) -> (i32, i32) {
    %c0_i32 = arith.constant 0 : i32
    %c0_i32_0 = arith.constant 0 : i32
    %c0_i32_1 = arith.constant 0 : i32
    return %c0_i32, %c0_i32_0 : i32, i32
  }
  func.func @transform_6(%arg0: i32) -> (i32, i32) {
    %c0_i32 = arith.constant 0 : i32
    %c0_i32_0 = arith.constant 0 : i32
    %c0_i32_1 = arith.constant 0 : i32
    return %c0_i32, %c0_i32_0 : i32, i32
  }
  func.func @transform_7(%arg0: i32) -> (i32, i32) {
    %c0_i32 = arith.constant 0 : i32
    %c0_i32_0 = arith.constant 0 : i32
    %c0_i32_1 = arith.constant 0 : i32
    return %c0_i32, %c0_i32_0 : i32, i32
  }
  func.func @transform_8(%arg0: i32) -> (i32, i32) {
    %c0_i32 = arith.constant 0 : i32
    %c0_i32_0 = arith.constant 0 : i32
    %c0_i32_1 = arith.constant 0 : i32
    return %c0_i32, %c0_i32_0 : i32, i32
  }
  func.func @transform_9(%arg0: i32) -> (i32, i32) {
    %c0_i32 = arith.constant 0 : i32
    %c0_i32_0 = arith.constant 0 : i32
    %c0_i32_1 = arith.constant 0 : i32
    return %c0_i32, %c0_i32_0 : i32, i32
  }
  func.func @transform_10(%arg0: i32) -> (i32, i32) {
    %c0_i32 = arith.constant 0 : i32
    %c0_i32_0 = arith.constant 0 : i32
    %c0_i32_1 = arith.constant 0 : i32
    return %c0_i32, %c0_i32_0 : i32, i32
  }
  func.func @transform_11(%arg0: i32) -> (i32, i32) {
    %c0_i32 = arith.constant 0 : i32
    %c0_i32_0 = arith.constant 0 : i32
    return %arg0, %c0_i32 : i32, i32
  }
}

</mosaic_0001>

<llo_original>
// kernel: tpu_custom_call.1
$region0: #{tpu_custom_call.1}
  #allocation0 [shape = 'u32[]', space=smem, size = 0x4, offset = 0x4, fixed_abs, tag = 'smem constant byte address 0x4 - core index']
  #allocation1 [shape = 'u32[72,128]{1,0:T(1,128)}', space=vmem, size = 0x9000, scoped, tag = 'internal scratch']
  %s0 = inlined_call_operand.vmem [shape: bf16[64,4], index: 0, kind: input, shape index: {}]
  %s1 = inlined_call_operand.vmem [shape: f32[8,32], index: 1, kind: input, shape index: {}]
  %s2 = inlined_call_operand.vmem [shape: bf16[4,32], index: 2, kind: input, shape index: {}]
  %s3 = inlined_call_operand.vmem [shape: bf16[32,32], index: 3, kind: input, shape index: {}]
  %s4 = inlined_call_operand.vmem [shape: f32[1,32], index: 4, kind: input, shape index: {}]
  %s5 = inlined_call_operand.vmem [shape: bf16[32,64], index: 5, kind: input, shape index: {}]
  %s6 = inlined_call_operand.vmem [shape: f32[1,64], index: 6, kind: input, shape index: {}]
  %s7 = inlined_call_operand.vmem [shape: bf16[64,8], index: 7, kind: input, shape index: {}]
  %s8 = inlined_call_operand.vmem [shape: f32[1,8], index: 8, kind: input, shape index: {}]
  %s9 = inlined_call_operand.vmem [shape: bf16[8,24], index: 9, kind: input, shape index: {}]
  %s10 = inlined_call_operand.vmem [shape: f32[1,24], index: 10, kind: input, shape index: {}]
  %s11 = inlined_call_operand.vmem [shape: bf16[64,24], index: 11, kind: output, shape index: {}]
  %s12 = sld [smem:[#allocation0]]
  $region54: #{tpu_custom_call.1} parent=0
    _
  %s14 = ssub.s32 1, %s12
  %s15 = scalar_select 0, %s14, %s12
  // Predicated region
  $region2: #{tpu_custom_call.1} parent=0 // pred_check
    _
  $region3: #{tpu_custom_call.1} parent=0 // pred_check_branch
    %17 = sbr.rel (0) target = $region5
  $region4: #{tpu_custom_call.1} parent=0 // pred_region
    _
  $region5: #{tpu_custom_call.1} parent=0 // pred_fallthru
    _
  // Predicated region
  $region6: #{tpu_custom_call.1} parent=0 // pred_check
    _
  $region7: #{tpu_custom_call.1} parent=0 // pred_check_branch
    %19 = sbr.rel (0) target = $region9
  $region8: #{tpu_custom_call.1} parent=0 // pred_region
    _
  $region9: #{tpu_custom_call.1} parent=0 // pred_fallthru
    _
  // Predicated region
  $region10: #{tpu_custom_call.1} parent=0 // pred_check
    _
  $region11: #{tpu_custom_call.1} parent=0 // pred_check_branch
    %21 = sbr.rel (0) target = $region13
  $region12: #{tpu_custom_call.1} parent=0 // pred_region
    _
  $region13: #{tpu_custom_call.1} parent=0 // pred_fallthru
    _
  // Predicated region
  $region14: #{tpu_custom_call.1} parent=0 // pred_check
    _
  $region15: #{tpu_custom_call.1} parent=0 // pred_check_branch
    %23 = sbr.rel (0) target = $region17
  $region16: #{tpu_custom_call.1} parent=0 // pred_region
    _
  $region17: #{tpu_custom_call.1} parent=0 // pred_fallthru
    _
  // Predicated region
  $region18: #{tpu_custom_call.1} parent=0 // pred_check
    _
  $region19: #{tpu_custom_call.1} parent=0 // pred_check_branch
    %25 = sbr.rel (0) target = $region21
  $region20: #{tpu_custom_call.1} parent=0 // pred_region
    _
  $region21: #{tpu_custom_call.1} parent=0 // pred_fallthru
    _
  // Predicated region
  $region22: #{tpu_custom_call.1} parent=0 // pred_check
    _
  $region23: #{tpu_custom_call.1} parent=0 // pred_check_branch
    %27 = sbr.rel (0) target = $region25
  $region24: #{tpu_custom_call.1} parent=0 // pred_region
    _
  $region25: #{tpu_custom_call.1} parent=0 // pred_fallthru
    _
  // Predicated region
  $region26: #{tpu_custom_call.1} parent=0 // pred_check
    _
  $region27: #{tpu_custom_call.1} parent=0 // pred_check_branch
    %29 = sbr.rel (0) target = $region29
  $region28: #{tpu_custom_call.1} parent=0 // pred_region
    _
  $region29: #{tpu_custom_call.1} parent=0 // pred_fallthru
    _
  // Predicated region
  $region30: #{tpu_custom_call.1} parent=0 // pred_check
    _
  $region31: #{tpu_custom_call.1} parent=0 // pred_check_branch
    %31 = sbr.rel (0) target = $region33
  $region32: #{tpu_custom_call.1} parent=0 // pred_region
    _
  $region33: #{tpu_custom_call.1} parent=0 // pred_fallthru
    _
  // Predicated region
  $region34: #{tpu_custom_call.1} parent=0 // pred_check
    _
  $region35: #{tpu_custom_call.1} parent=0 // pred_check_branch
    %33 = sbr.rel (0) target = $region37
  $region36: #{tpu_custom_call.1} parent=0 // pred_region
    _
  $region37: #{tpu_custom_call.1} parent=0 // pred_fallthru
    _
  // Predicated region
  $region38: #{tpu_custom_call.1} parent=0 // pred_check
    _
  $region39: #{tpu_custom_call.1} parent=0 // pred_check_branch
    %35 = sbr.rel (0) target = $region41
  $region40: #{tpu_custom_call.1} parent=0 // pred_region
    _
  $region41: #{tpu_custom_call.1} parent=0 // pred_fallthru
    _
  // Predicated region
  $region42: #{tpu_custom_call.1} parent=0 // pred_check
    _
  $region43: #{tpu_custom_call.1} parent=0 // pred_check_branch
    %37 = sbr.rel (0) target = $region45
  $region44: #{tpu_custom_call.1} parent=0 // pred_region
    _
  $region45: #{tpu_custom_call.1} parent=0 // pred_fallthru
    _
  %v39 = vld [vmem:[%s0] sm:$0xf]
  %v40 = vld [vmem:[%s0 + $0x4] sm:$0xf]
  %v41 = vld [vmem:[%s0 + $0x8] sm:$0xf]
  %v42 = vld [vmem:[%s0 + $0xc] sm:$0xf]
  %v43 = vld [vmem:[%s0 + $0x10] sm:$0xf]
  %v44 = vld [vmem:[%s0 + $0x14] sm:$0xf]
  %v45 = vld [vmem:[%s0 + $0x18] sm:$0xf]
  %v46 = vld [vmem:[%s0 + $0x1c] sm:$0xf]
  %v47 = vld [vmem:[%s2] sm:$0x3]
  %v56 = vunpack.c.l.b16 %v39
  %v57 = vunpack.c.l.b16 %v40
  %v58 = vunpack.c.l.b16 %v41
  %v59 = vunpack.c.l.b16 %v42
  %v60 = vunpack.c.l.b16 %v43
  %v61 = vunpack.c.l.b16 %v44
  %v62 = vunpack.c.l.b16 %v45
  %v63 = vunpack.c.l.b16 %v46
  %v64 = vpack.c.b16 %v57, %v56
  %v65 = vpack.c.b16 %v59, %v58
  %v66 = vpack.c.b16 %v61, %v60
  %v67 = vpack.c.b16 %v63, %v62
  %vm68 = vcmask 31744
  %v70 = vsel %vm68, %v64, 0
  %v73 = vsel %vm68, %v65, 0
  %v76 = vsel %vm68, %v66, 0
  %v79 = vsel %vm68, %v67, 0
  %vm81 = vcmask 1041408
  %v83 = vsel %vm81, %v47, 0
  %85 = vmatpush.bf16.msra.mxu0 0
  %86 = vmatpush.bf16.msra.mxu0 0
  %87 = vmatpush.bf16.msra.mxu0 0
  %88 = vmatpush.bf16.msra.mxu0 0
  %89 = vmatpush.bf16.msra.mxu0 0
  %90 = vmatpush.bf16.msra.mxu0 0
  %91 = vmatpush.bf16.msra.mxu0 0
  %92 = vmatpush.bf16.msra.mxu0 %v83
  %93 = vmatmul.bf16.gmra.mxu0 %v70
  %v94 = vpop.f32.mrf.mxu0
  %v95 = vadd.f32 0.0, %v94
  %v96 = vpop.f32.mrf.mxu0
  %v97 = vadd.f32 0.0, %v96
  %98 = vmatmul.bf16.gmra.mxu0 %v73
  %v99 = vpop.f32.mrf.mxu0
  %v100 = vadd.f32 0.0, %v99
  %v101 = vpop.f32.mrf.mxu0
  %v102 = vadd.f32 0.0, %v101
  %103 = vmatmul.bf16.gmra.mxu0 %v76
  %v104 = vpop.f32.mrf.mxu0
  %v105 = vadd.f32 0.0, %v104
  %v106 = vpop.f32.mrf.mxu0
  %v107 = vadd.f32 0.0, %v106
  %108 = vmatmul.bf16.gmra.mxu0 %v79
  %v109 = vpop.f32.mrf.mxu0
  %v110 = vadd.f32 0.0, %v109
  %v111 = vpop.f32.mrf.mxu0
  %v112 = vadd.f32 0.0, %v111
  %113 = vdwg.mxu0
  %v114 = vld [vmem:[%s1] sm:$0xff]
  %v115 = vadd.f32 %v95, %v114
  %v116 = vadd.f32 %v97, %v114
  %v117 = vadd.f32 %v100, %v114
  %v118 = vadd.f32 %v102, %v114
  %v119 = vadd.f32 %v105, %v114
  %v120 = vadd.f32 %v107, %v114
  %v121 = vadd.f32 %v110, %v114
  %v122 = vadd.f32 %v112, %v114
  %vm123 = vcmp.ge.f32.partialorder %v115, 0.0
  %vm124 = vcmp.ge.f32.partialorder %v116, 0.0
  %vm125 = vcmp.ge.f32.partialorder %v117, 0.0
  %vm126 = vcmp.ge.f32.partialorder %v118, 0.0
  %vm127 = vcmp.ge.f32.partialorder %v119, 0.0
  %vm128 = vcmp.ge.f32.partialorder %v120, 0.0
  %vm129 = vcmp.ge.f32.partialorder %v121, 0.0
  %vm130 = vcmp.ge.f32.partialorder %v122, 0.0
  %v131 = vmul.f32 %v115, 0.2
  %v132 = vmul.f32 %v116, 0.2
  %v133 = vmul.f32 %v117, 0.2
  %v134 = vmul.f32 %v118, 0.2
  %v135 = vmul.f32 %v119, 0.2
  %v136 = vmul.f32 %v120, 0.2
  %v137 = vmul.f32 %v121, 0.2
  %v138 = vmul.f32 %v122, 0.2
  %v139 = vsel %vm123, %v115, %v131
  %v140 = vsel %vm124, %v116, %v132
  %v141 = vsel %vm125, %v117, %v133
  %v142 = vsel %vm126, %v118, %v134
  %v143 = vsel %vm127, %v119, %v135
  %v144 = vsel %vm128, %v120, %v136
  %v145 = vsel %vm129, %v121, %v137
  %v146 = vsel %vm130, %v122, %v138
  %v147 = vpack.c.bf16 %v140, %v139
  %v148 = vpack.c.bf16 %v142, %v141
  %v149 = vpack.c.bf16 %v144, %v143
  %v150 = vpack.c.bf16 %v146, %v145
  %v151 = vld [vmem:[%s3] sm:$0xf]
  %v152 = vld [vmem:[%s3 + $0x4] sm:$0xf]
  %v153 = vld [vmem:[%s3 + $0x8] sm:$0xf]
  %v154 = vld [vmem:[%s3 + $0xc] sm:$0xf]
  %v155 = vld [vmem:[%s4] sm:$0x1]
  %v157 = vperm.slane %v155, 0
  %v163 = vunpack.c.l.b16 %v151
  %v164 = vunpack.c.l.b16 %v152
  %v165 = vunpack.c.l.b16 %v153
  %v166 = vunpack.c.l.b16 %v154
  %v167 = vpack.c.b16 %v164, %v163
  %v168 = vpack.c.b16 %v166, %v165
  %vm171 = vcmask 261120
  %v173 = vsel %vm171, %v147, 0
  %v176 = vsel %vm171, %v148, 0
  %v179 = vsel %vm171, %v149, 0
  %v182 = vsel %vm171, %v150, 0
  %184 = vmatpush.bf16.msra.mxu0 0
  %185 = vmatpush.bf16.msra.mxu0 0
  %186 = vmatpush.bf16.msra.mxu0 0
  %187 = vmatpush.bf16.msra.mxu0 0
  %188 = vmatpush.bf16.msra.mxu0 0
  %189 = vmatpush.bf16.msra.mxu0 0
  %190 = vmatpush.bf16.msra.mxu0 %v168
  %191 = vmatpush.bf16.msra.mxu0 %v167
  %192 = vmatmul.bf16.gmra.mxu0 %v173
  %v193 = vpop.f32.mrf.mxu0
  %v194 = vadd.f32 %v157, %v193
  %v195 = vpop.f32.mrf.mxu0
  %v196 = vadd.f32 %v157, %v195
  %197 = vmatmul.bf16.gmra.mxu0 %v176
  %v198 = vpop.f32.mrf.mxu0
  %v199 = vadd.f32 %v157, %v198
  %v200 = vpop.f32.mrf.mxu0
  %v201 = vadd.f32 %v157, %v200
  %202 = vmatmul.bf16.gmra.mxu0 %v179
  %v203 = vpop.f32.mrf.mxu0
  %v204 = vadd.f32 %v157, %v203
  %v205 = vpop.f32.mrf.mxu0
  %v206 = vadd.f32 %v157, %v205
  %207 = vmatmul.bf16.gmra.mxu0 %v182
  %v208 = vpop.f32.mrf.mxu0
  %v209 = vadd.f32 %v157, %v208
  %v210 = vpop.f32.mrf.mxu0
  %v211 = vadd.f32 %v157, %v210
  %212 = vdwg.mxu0
  %vm213 = vcmp.ge.f32.partialorder %v194, 0.0
  %vm214 = vcmp.ge.f32.partialorder %v196, 0.0
  %vm215 = vcmp.ge.f32.partialorder %v199, 0.0
  %vm216 = vcmp.ge.f32.partialorder %v201, 0.0
  %vm217 = vcmp.ge.f32.partialorder %v204, 0.0
  %vm218 = vcmp.ge.f32.partialorder %v206, 0.0
  %vm219 = vcmp.ge.f32.partialorder %v209, 0.0
  %vm220 = vcmp.ge.f32.partialorder %v211, 0.0
  %v221 = vmul.f32 %v194, 0.2
  %v222 = vmul.f32 %v196, 0.2
  %v223 = vmul.f32 %v199, 0.2
  %v224 = vmul.f32 %v201, 0.2
  %v225 = vmul.f32 %v204, 0.2
  %v226 = vmul.f32 %v206, 0.2
  %v227 = vmul.f32 %v209, 0.2
  %v228 = vmul.f32 %v211, 0.2
  %v229 = vsel %vm213, %v194, %v221
  %v230 = vsel %vm214, %v196, %v222
  %v231 = vsel %vm215, %v199, %v223
  %v232 = vsel %vm216, %v201, %v224
  %v233 = vsel %vm217, %v204, %v225
  %v234 = vsel %vm218, %v206, %v226
  %v235 = vsel %vm219, %v209, %v227
  %v236 = vsel %vm220, %v211, %v228
  %v237 = vpack.c.bf16 %v230, %v229
  %v238 = vpack.c.bf16 %v232, %v231
  %v239 = vpack.c.bf16 %v234, %v233
  %v240 = vpack.c.bf16 %v236, %v235
  %v241 = vld [vmem:[%s5] sm:$0xf]
  %v242 = vld [vmem:[%s5 + $0x4] sm:$0xf]
  %v243 = vld [vmem:[%s5 + $0x8] sm:$0xf]
  %v244 = vld [vmem:[%s5 + $0xc] sm:$0xf]
  %v245 = vld [vmem:[%s6] sm:$0x1]
  %v247 = vperm.slane %v245, 0
  %v253 = vunpack.c.l.b16 %v241
  %v254 = vunpack.c.l.b16 %v242
  %v255 = vunpack.c.l.b16 %v243
  %v256 = vunpack.c.l.b16 %v244
  %v257 = vpack.c.b16 %v254, %v253
  %v258 = vpack.c.b16 %v256, %v255
  %v262 = vsel %vm171, %v237, 0
  %v265 = vsel %vm171, %v238, 0
  %v268 = vsel %vm171, %v239, 0
  %v271 = vsel %vm171, %v240, 0
  %273 = vmatpush.bf16.msra.mxu0 0
  %274 = vmatpush.bf16.msra.mxu0 0
  %275 = vmatpush.bf16.msra.mxu0 0
  %276 = vmatpush.bf16.msra.mxu0 0
  %277 = vmatpush.bf16.msra.mxu0 0
  %278 = vmatpush.bf16.msra.mxu0 0
  %279 = vmatpush.bf16.msra.mxu0 %v258
  %280 = vmatpush.bf16.msra.mxu0 %v257
  %281 = vmatmul.bf16.gmra.mxu0 %v262
  %v282 = vpop.f32.mrf.mxu0
  %v283 = vadd.f32 %v247, %v282
  %v284 = vpop.f32.mrf.mxu0
  %v285 = vadd.f32 %v247, %v284
  %286 = vmatmul.bf16.gmra.mxu0 %v265
  %v287 = vpop.f32.mrf.mxu0
  %v288 = vadd.f32 %v247, %v287
  %v289 = vpop.f32.mrf.mxu0
  %v290 = vadd.f32 %v247, %v289
  %291 = vmatmul.bf16.gmra.mxu0 %v268
  %v292 = vpop.f32.mrf.mxu0
  %v293 = vadd.f32 %v247, %v292
  %v294 = vpop.f32.mrf.mxu0
  %v295 = vadd.f32 %v247, %v294
  %296 = vmatmul.bf16.gmra.mxu0 %v271
  %v297 = vpop.f32.mrf.mxu0
  %v298 = vadd.f32 %v247, %v297
  %v299 = vpop.f32.mrf.mxu0
  %v300 = vadd.f32 %v247, %v299
  %301 = vdwg.mxu0
  %vm302 = vcmp.ge.f32.partialorder %v283, 0.0
  %vm303 = vcmp.ge.f32.partialorder %v285, 0.0
  %vm304 = vcmp.ge.f32.partialorder %v288, 0.0
  %vm305 = vcmp.ge.f32.partialorder %v290, 0.0
  %vm306 = vcmp.ge.f32.partialorder %v293, 0.0
  %vm307 = vcmp.ge.f32.partialorder %v295, 0.0
  %vm308 = vcmp.ge.f32.partialorder %v298, 0.0
  %vm309 = vcmp.ge.f32.partialorder %v300, 0.0
  %v310 = vmul.f32 %v283, 0.2
  %v311 = vmul.f32 %v285, 0.2
  %v312 = vmul.f32 %v288, 0.2
  %v313 = vmul.f32 %v290, 0.2
  %v314 = vmul.f32 %v293, 0.2
  %v315 = vmul.f32 %v295, 0.2
  %v316 = vmul.f32 %v298, 0.2
  %v317 = vmul.f32 %v300, 0.2
  %v318 = vsel %vm302, %v283, %v310
  %v319 = vsel %vm303, %v285, %v311
  %v320 = vsel %vm304, %v288, %v312
  %v321 = vsel %vm305, %v290, %v313
  %v322 = vsel %vm306, %v293, %v314
  %v323 = vsel %vm307, %v295, %v315
  %v324 = vsel %vm308, %v298, %v316
  %v325 = vsel %vm309, %v300, %v317
  %v326 = vpack.c.bf16 %v319, %v318
  %v327 = vpack.c.bf16 %v321, %v320
  %v328 = vpack.c.bf16 %v323, %v322
  %v329 = vpack.c.bf16 %v325, %v324
  %v330 = vld [vmem:[%s7] sm:$0xf]
  %v331 = vld [vmem:[%s7 + $0x4] sm:$0xf]
  %v332 = vld [vmem:[%s7 + $0x8] sm:$0xf]
  %v333 = vld [vmem:[%s7 + $0xc] sm:$0xf]
  %v334 = vld [vmem:[%s7 + $0x10] sm:$0xf]
  %v335 = vld [vmem:[%s7 + $0x14] sm:$0xf]
  %v336 = vld [vmem:[%s7 + $0x18] sm:$0xf]
  %v337 = vld [vmem:[%s7 + $0x1c] sm:$0xf]
  %v338 = vld [vmem:[%s8] sm:$0x1]
  %v340 = vperm.slane %v338, 0
  %v350 = vunpack.c.l.b16 %v330
  %v351 = vunpack.c.l.b16 %v331
  %v352 = vunpack.c.l.b16 %v332
  %v353 = vunpack.c.l.b16 %v333
  %v354 = vunpack.c.l.b16 %v334
  %v355 = vunpack.c.l.b16 %v335
  %v356 = vunpack.c.l.b16 %v336
  %v357 = vunpack.c.l.b16 %v337
  %v358 = vpack.c.b16 %v351, %v350
  %v359 = vpack.c.b16 %v353, %v352
  %v360 = vpack.c.b16 %v355, %v354
  %v361 = vpack.c.b16 %v357, %v356
  %vm366 = vcmask 523264
  %v368 = vsel %vm366, %v326, 0
  %v371 = vsel %vm366, %v327, 0
  %v374 = vsel %vm366, %v328, 0
  %v377 = vsel %vm366, %v329, 0
  %379 = vmatpush.bf16.msra.mxu0 0
  %380 = vmatpush.bf16.msra.mxu0 0
  %381 = vmatpush.bf16.msra.mxu0 0
  %382 = vmatpush.bf16.msra.mxu0 0
  %383 = vmatpush.bf16.msra.mxu0 %v361
  %384 = vmatpush.bf16.msra.mxu0 %v360
  %385 = vmatpush.bf16.msra.mxu0 %v359
  %386 = vmatpush.bf16.msra.mxu0 %v358
  %387 = vmatmul.bf16.gmra.mxu0 %v368
  %v388 = vpop.f32.mrf.mxu0
  %v389 = vadd.f32 %v340, %v388
  %v390 = vpop.f32.mrf.mxu0
  %v391 = vadd.f32 %v340, %v390
  %392 = vmatmul.bf16.gmra.mxu0 %v371
  %v393 = vpop.f32.mrf.mxu0
  %v394 = vadd.f32 %v340, %v393
  %v395 = vpop.f32.mrf.mxu0
  %v396 = vadd.f32 %v340, %v395
  %397 = vmatmul.bf16.gmra.mxu0 %v374
  %v398 = vpop.f32.mrf.mxu0
  %v399 = vadd.f32 %v340, %v398
  %v400 = vpop.f32.mrf.mxu0
  %v401 = vadd.f32 %v340, %v400
  %402 = vmatmul.bf16.gmra.mxu0 %v377
  %v403 = vpop.f32.mrf.mxu0
  %v404 = vadd.f32 %v340, %v403
  %v405 = vpop.f32.mrf.mxu0
  %v406 = vadd.f32 %v340, %v405
  %407 = vdwg.mxu0
  %vm408 = vcmp.ge.f32.partialorder %v389, 0.0
  %vm409 = vcmp.ge.f32.partialorder %v391, 0.0
  %vm410 = vcmp.ge.f32.partialorder %v394, 0.0
  %vm411 = vcmp.ge.f32.partialorder %v396, 0.0
  %vm412 = vcmp.ge.f32.partialorder %v399, 0.0
  %vm413 = vcmp.ge.f32.partialorder %v401, 0.0
  %vm414 = vcmp.ge.f32.partialorder %v404, 0.0
  %vm415 = vcmp.ge.f32.partialorder %v406, 0.0
  %v416 = vmul.f32 %v389, 0.2
  %v417 = vmul.f32 %v391, 0.2
  %v418 = vmul.f32 %v394, 0.2
  %v419 = vmul.f32 %v396, 0.2
  %v420 = vmul.f32 %v399, 0.2
  %v421 = vmul.f32 %v401, 0.2
  %v422 = vmul.f32 %v404, 0.2
  %v423 = vmul.f32 %v406, 0.2
  %v424 = vsel %vm408, %v389, %v416
  %v425 = vsel %vm409, %v391, %v417
  %v426 = vsel %vm410, %v394, %v418
  %v427 = vsel %vm411, %v396, %v419
  %v428 = vsel %vm412, %v399, %v420
  %v429 = vsel %vm413, %v401, %v421
  %v430 = vsel %vm414, %v404, %v422
  %v431 = vsel %vm415, %v406, %v423
  %v432 = vpack.c.bf16 %v425, %v424
  %v433 = vpack.c.bf16 %v427, %v426
  %v434 = vpack.c.bf16 %v429, %v428
  %v435 = vpack.c.bf16 %v431, %v430
  %v436 = vld [vmem:[%s9] sm:$0xf]
  %v437 = vld [vmem:[%s10] sm:$0x1]
  %v439 = vperm.slane %v437, 0
  %vm441 = vcmask 64512
  %v443 = vsel %vm441, %v432, 0
  %v446 = vsel %vm441, %v433, 0
  %v449 = vsel %vm441, %v434, 0
  %v452 = vsel %vm441, %v435, 0
  %vm454 = vcmask 1043456
  %v456 = vsel %vm454, %v436, 0
  %458 = vmatpush.bf16.msra.mxu0 0
  %459 = vmatpush.bf16.msra.mxu0 0
  %460 = vmatpush.bf16.msra.mxu0 0
  %461 = vmatpush.bf16.msra.mxu0 0
  %462 = vmatpush.bf16.msra.mxu0 0
  %463 = vmatpush.bf16.msra.mxu0 0
  %464 = vmatpush.bf16.msra.mxu0 0
  %465 = vmatpush.bf16.msra.mxu0 %v456
  %466 = vmatmul.bf16.gmra.mxu0 %v443
  %v467 = vpop.f32.mrf.mxu0
  %v468 = vadd.f32 %v439, %v467
  %v469 = vpop.f32.mrf.mxu0
  %v470 = vadd.f32 %v439, %v469
  %471 = vmatmul.bf16.gmra.mxu0 %v446
  %v472 = vpop.f32.mrf.mxu0
  %v473 = vadd.f32 %v439, %v472
  %v474 = vpop.f32.mrf.mxu0
  %v475 = vadd.f32 %v439, %v474
  %476 = vmatmul.bf16.gmra.mxu0 %v449
  %v477 = vpop.f32.mrf.mxu0
  %v478 = vadd.f32 %v439, %v477
  %v479 = vpop.f32.mrf.mxu0
  %v480 = vadd.f32 %v439, %v479
  %481 = vmatmul.bf16.gmra.mxu0 %v452
  %v482 = vpop.f32.mrf.mxu0
  %v483 = vadd.f32 %v439, %v482
  %v484 = vpop.f32.mrf.mxu0
  %v485 = vadd.f32 %v439, %v484
  %486 = vdwg.mxu0
  %v487 = vpack.c.bf16 %v468, %v468
  %v488 = vpack.c.bf16 %v470, %v470
  %v489 = vpack.c.bf16 %v473, %v473
  %v490 = vpack.c.bf16 %v475, %v475
  %v491 = vpack.c.bf16 %v478, %v478
  %v492 = vpack.c.bf16 %v480, %v480
  %v493 = vpack.c.bf16 %v483, %v483
  %v494 = vpack.c.bf16 %v485, %v485
  %vm495 = vcmask 191488
  %496 = vst.msk [vmem:[%s11] sm:$0xf] %vm495, %v487
  %497 = vst.msk [vmem:[%s11 + $0x4] sm:$0xf] %vm495, %v488
  %498 = vst.msk [vmem:[%s11 + $0x8] sm:$0xf] %vm495, %v489
  %499 = vst.msk [vmem:[%s11 + $0xc] sm:$0xf] %vm495, %v490
  %500 = vst.msk [vmem:[%s11 + $0x10] sm:$0xf] %vm495, %v491
  %501 = vst.msk [vmem:[%s11 + $0x14] sm:$0xf] %vm495, %v492
  %502 = vst.msk [vmem:[%s11 + $0x18] sm:$0xf] %vm495, %v493
  %503 = vst.msk [vmem:[%s11 + $0x1c] sm:$0xf] %vm495, %v494
  // Predicated region
  $region46: #{tpu_custom_call.1} parent=0 // pred_check
    _
  $region47: #{tpu_custom_call.1} parent=0 // pred_check_branch
    %505 = sbr.rel (0) target = $region49
  $region48: #{tpu_custom_call.1} parent=0 // pred_region
    _
  $region49: #{tpu_custom_call.1} parent=0 // pred_fallthru
    _
  // Predicated region
  $region50: #{tpu_custom_call.1} parent=0 // pred_check
    _
  $region51: #{tpu_custom_call.1} parent=0 // pred_check_branch
    %507 = sbr.rel (0) target = $region53
  $region52: #{tpu_custom_call.1} parent=0 // pred_region
    _
  $region53: #{tpu_custom_call.1} parent=0 // pred_fallthru
    _

// kernel: tpu_custom_call.1
$region0: #{tpu_custom_call.1}
  #allocation0 [shape = 'u32[]', space=smem, size = 0x4, offset = 0x4, fixed_abs, tag = 'smem constant byte address 0x4 - core index']
  #allocation1 [shape = 'u32[72,128]{1,0:T(1,128)}', space=vmem, size = 0x9000, scoped, tag = 'internal scratch']
  %s0 = inlined_call_operand.vmem [shape: bf16[64,4], index: 0, kind: input, shape index: {}]
  %s1 = inlined_call_operand.vmem [shape: f32[8,32], index: 1, kind: input, shape index: {}]
  %s2 = inlined_call_operand.vmem [shape: bf16[4,32], index: 2, kind: input, shape index: {}]
  %s3 = inlined_call_operand.vmem [shape: bf16[32,32], index: 3, kind: input, shape index: {}]
  %s4 = inlined_call_operand.vmem [shape: f32[1,32], index: 4, kind: input, shape index: {}]
  %s5 = inlined_call_operand.vmem [shape: bf16[32,64], index: 5, kind: input, shape index: {}]
  %s6 = inlined_call_operand.vmem [shape: f32[1,64], index: 6, kind: input, shape index: {}]
  %s7 = inlined_call_operand.vmem [shape: bf16[64,8], index: 7, kind: input, shape index: {}]
  %s8 = inlined_call_operand.vmem [shape: f32[1,8], index: 8, kind: input, shape index: {}]
  %s9 = inlined_call_operand.vmem [shape: bf16[8,24], index: 9, kind: input, shape index: {}]
  %s10 = inlined_call_operand.vmem [shape: f32[1,24], index: 10, kind: input, shape index: {}]
  %s11 = inlined_call_operand.vmem [shape: bf16[64,24], index: 11, kind: output, shape index: {}]
  %s12 = sld [smem:[#allocation0]]
  $region54: #{tpu_custom_call.1} parent=0
    _
  %s14 = ssub.s32 1, %s12
  %s15 = scalar_select 0, %s14, %s12
  // Predicated region
  $region2: #{tpu_custom_call.1} parent=0 // pred_check
    _
  $region3: #{tpu_custom_call.1} parent=0 // pred_check_branch
    %17 = sbr.rel (0) target = $region5
  $region4: #{tpu_custom_call.1} parent=0 // pred_region
    _
  $region5: #{tpu_custom_call.1} parent=0 // pred_fallthru
    _
  // Predicated region
  $region6: #{tpu_custom_call.1} parent=0 // pred_check
    _
  $region7: #{tpu_custom_call.1} parent=0 // pred_check_branch
    %19 = sbr.rel (0) target = $region9
  $region8: #{tpu_custom_call.1} parent=0 // pred_region
    _
  $region9: #{tpu_custom_call.1} parent=0 // pred_fallthru
    _
  // Predicated region
  $region10: #{tpu_custom_call.1} parent=0 // pred_check
    _
  $region11: #{tpu_custom_call.1} parent=0 // pred_check_branch
    %21 = sbr.rel (0) target = $region13
  $region12: #{tpu_custom_call.1} parent=0 // pred_region
    _
  $region13: #{tpu_custom_call.1} parent=0 // pred_fallthru
    _
  // Predicated region
  $region14: #{tpu_custom_call.1} parent=0 // pred_check
    _
  $region15: #{tpu_custom_call.1} parent=0 // pred_check_branch
    %23 = sbr.rel (0) target = $region17
  $region16: #{tpu_custom_call.1} parent=0 // pred_region
    _
  $region17: #{tpu_custom_call.1} parent=0 // pred_fallthru
    _
  // Predicated region
  $region18: #{tpu_custom_call.1} parent=0 // pred_check
    _
  $region19: #{tpu_custom_call.1} parent=0 // pred_check_branch
    %25 = sbr.rel (0) target = $region21
  $region20: #{tpu_custom_call.1} parent=0 // pred_region
    _
  $region21: #{tpu_custom_call.1} parent=0 // pred_fallthru
    _
  // Predicated region
  $region22: #{tpu_custom_call.1} parent=0 // pred_check
    _
  $region23: #{tpu_custom_call.1} parent=0 // pred_check_branch
    %27 = sbr.rel (0) target = $region25
  $region24: #{tpu_custom_call.1} parent=0 // pred_region
    _
  $region25: #{tpu_custom_call.1} parent=0 // pred_fallthru
    _
  // Predicated region
  $region26: #{tpu_custom_call.1} parent=0 // pred_check
    _
  $region27: #{tpu_custom_call.1} parent=0 // pred_check_branch
    %29 = sbr.rel (0) target = $region29
  $region28: #{tpu_custom_call.1} parent=0 // pred_region
    _
  $region29: #{tpu_custom_call.1} parent=0 // pred_fallthru
    _
  // Predicated region
  $region30: #{tpu_custom_call.1} parent=0 // pred_check
    _
  $region31: #{tpu_custom_call.1} parent=0 // pred_check_branch
    %31 = sbr.rel (0) target = $region33
  $region32: #{tpu_custom_call.1} parent=0 // pred_region
    _
  $region33: #{tpu_custom_call.1} parent=0 // pred_fallthru
    _
  // Predicated region
  $region34: #{tpu_custom_call.1} parent=0 // pred_check
    _
  $region35: #{tpu_custom_call.1} parent=0 // pred_check_branch
    %33 = sbr.rel (0) target = $region37
  $region36: #{tpu_custom_call.1} parent=0 // pred_region
    _
  $region37: #{tpu_custom_call.1} parent=0 // pred_fallthru
    _
  // Predicated region
  $region38: #{tpu_custom_call.1} parent=0 // pred_check
    _
  $region39: #{tpu_custom_call.1} parent=0 // pred_check_branch
    %35 = sbr.rel (0) target = $region41
  $region40: #{tpu_custom_call.1} parent=0 // pred_region
    _
  $region41: #{tpu_custom_call.1} parent=0 // pred_fallthru
    _
  // Predicated region
  $region42: #{tpu_custom_call.1} parent=0 // pred_check
    _
  $region43: #{tpu_custom_call.1} parent=0 // pred_check_branch
    %37 = sbr.rel (0) target = $region45
  $region44: #{tpu_custom_call.1} parent=0 // pred_region
    _
  $region45: #{tpu_custom_call.1} parent=0 // pred_fallthru
    _
  %v39 = vld [vmem:[%s0] sm:$0xf]
  %v40 = vld [vmem:[%s0 + $0x4] sm:$0xf]
  %v41 = vld [vmem:[%s0 + $0x8] sm:$0xf]
  %v42 = vld [vmem:[%s0 + $0xc] sm:$0xf]
  %v43 = vld [vmem:[%s0 + $0x10] sm:$0xf]
  %v44 = vld [vmem:[%s0 + $0x14] sm:$0xf]
  %v45 = vld [vmem:[%s0 + $0x18] sm:$0xf]
  %v46 = vld [vmem:[%s0 + $0x1c] sm:$0xf]
  %v47 = vld [vmem:[%s2] sm:$0x3]
  %v56 = vunpack.c.l.b16 %v39
  %v57 = vunpack.c.l.b16 %v40
  %v58 = vunpack.c.l.b16 %v41
  %v59 = vunpack.c.l.b16 %v42
  %v60 = vunpack.c.l.b16 %v43
  %v61 = vunpack.c.l.b16 %v44
  %v62 = vunpack.c.l.b16 %v45
  %v63 = vunpack.c.l.b16 %v46
  %v64 = vpack.c.b16 %v57, %v56
  %v65 = vpack.c.b16 %v59, %v58
  %v66 = vpack.c.b16 %v61, %v60
  %v67 = vpack.c.b16 %v63, %v62
  %vm68 = vcmask 31744
  %v70 = vsel %vm68, %v64, 0
  %v73 = vsel %vm68, %v65, 0
  %v76 = vsel %vm68, %v66, 0
  %v79 = vsel %vm68, %v67, 0
  %vm81 = vcmask 1041408
  %v83 = vsel %vm81, %v47, 0
  %85 = vmatpush.bf16.msra.mxu0 0
  %86 = vmatpush.bf16.msra.mxu0 0
  %87 = vmatpush.bf16.msra.mxu0 0
  %88 = vmatpush.bf16.msra.mxu0 0
  %89 = vmatpush.bf16.msra.mxu0 0
  %90 = vmatpush.bf16.msra.mxu0 0
  %91 = vmatpush.bf16.msra.mxu0 0
  %92 = vmatpush.bf16.msra.mxu0 %v83
  %93 = vmatmul.bf16.gmra.mxu0 %v70
  %v94 = vpop.f32.mrf.mxu0
  %v95 = vadd.f32 0.0, %v94
  %v96 = vpop.f32.mrf.mxu0
  %v97 = vadd.f32 0.0, %v96
  %98 = vmatmul.bf16.gmra.mxu0 %v73
  %v99 = vpop.f32.mrf.mxu0
  %v100 = vadd.f32 0.0, %v99
  %v101 = vpop.f32.mrf.mxu0
  %v102 = vadd.f32 0.0, %v101
  %103 = vmatmul.bf16.gmra.mxu0 %v76
  %v104 = vpop.f32.mrf.mxu0
  %v105 = vadd.f32 0.0, %v104
  %v106 = vpop.f32.mrf.mxu0
  %v107 = vadd.f32 0.0, %v106
  %108 = vmatmul.bf16.gmra.mxu0 %v79
  %v109 = vpop.f32.mrf.mxu0
  %v110 = vadd.f32 0.0, %v109
  %v111 = vpop.f32.mrf.mxu0
  %v112 = vadd.f32 0.0, %v111
  %113 = vdwg.mxu0
  %v114 = vld [vmem:[%s1] sm:$0xff]
  %v115 = vadd.f32 %v95, %v114
  %v116 = vadd.f32 %v97, %v114
  %v117 = vadd.f32 %v100, %v114
  %v118 = vadd.f32 %v102, %v114
  %v119 = vadd.f32 %v105, %v114
  %v120 = vadd.f32 %v107, %v114
  %v121 = vadd.f32 %v110, %v114
  %v122 = vadd.f32 %v112, %v114
  %vm123 = vcmp.ge.f32.partialorder %v115, 0.0
  %vm124 = vcmp.ge.f32.partialorder %v116, 0.0
  %vm125 = vcmp.ge.f32.partialorder %v117, 0.0
  %vm126 = vcmp.ge.f32.partialorder %v118, 0.0
  %vm127 = vcmp.ge.f32.partialorder %v119, 0.0
  %vm128 = vcmp.ge.f32.partialorder %v120, 0.0
  %vm129 = vcmp.ge.f32.partialorder %v121, 0.0
  %vm130 = vcmp.ge.f32.partialorder %v122, 0.0
  %v131 = vmul.f32 %v115, 0.2
  %v132 = vmul.f32 %v116, 0.2
  %v133 = vmul.f32 %v117, 0.2
  %v134 = vmul.f32 %v118, 0.2
  %v135 = vmul.f32 %v119, 0.2
  %v136 = vmul.f32 %v120, 0.2
  %v137 = vmul.f32 %v121, 0.2
  %v138 = vmul.f32 %v122, 0.2
  %v139 = vsel %vm123, %v115, %v131
  %v140 = vsel %vm124, %v116, %v132
  %v141 = vsel %vm125, %v117, %v133
  %v142 = vsel %vm126, %v118, %v134
  %v143 = vsel %vm127, %v119, %v135
  %v144 = vsel %vm128, %v120, %v136
  %v145 = vsel %vm129, %v121, %v137
  %v146 = vsel %vm130, %v122, %v138
  %v147 = vpack.c.bf16 %v140, %v139
  %v148 = vpack.c.bf16 %v142, %v141
  %v149 = vpack.c.bf16 %v144, %v143
  %v150 = vpack.c.bf16 %v146, %v145
  %v151 = vld [vmem:[%s3] sm:$0xf]
  %v152 = vld [vmem:[%s3 + $0x4] sm:$0xf]
  %v153 = vld [vmem:[%s3 + $0x8] sm:$0xf]
  %v154 = vld [vmem:[%s3 + $0xc] sm:$0xf]
  %v155 = vld [vmem:[%s4] sm:$0x1]
  %v157 = vperm.slane %v155, 0
  %v163 = vunpack.c.l.b16 %v151
  %v164 = vunpack.c.l.b16 %v152
  %v165 = vunpack.c.l.b16 %v153
  %v166 = vunpack.c.l.b16 %v154
  %v167 = vpack.c.b16 %v164, %v163
  %v168 = vpack.c.b16 %v166, %v165
  %vm171 = vcmask 261120
  %v173 = vsel %vm171, %v147, 0
  %v176 = vsel %vm171, %v148, 0
  %v179 = vsel %vm171, %v149, 0
  %v182 = vsel %vm171, %v150, 0
  %184 = vmatpush.bf16.msra.mxu0 0
  %185 = vmatpush.bf16.msra.mxu0 0
  %186 = vmatpush.bf16.msra.mxu0 0
  %187 = vmatpush.bf16.msra.mxu0 0
  %188 = vmatpush.bf16.msra.mxu0 0
  %189 = vmatpush.bf16.msra.mxu0 0
  %190 = vmatpush.bf16.msra.mxu0 %v168
  %191 = vmatpush.bf16.msra.mxu0 %v167
  %192 = vmatmul.bf16.gmra.mxu0 %v173
  %v193 = vpop.f32.mrf.mxu0
  %v194 = vadd.f32 %v157, %v193
  %v195 = vpop.f32.mrf.mxu0
  %v196 = vadd.f32 %v157, %v195
  %197 = vmatmul.bf16.gmra.mxu0 %v176
  %v198 = vpop.f32.mrf.mxu0
  %v199 = vadd.f32 %v157, %v198
  %v200 = vpop.f32.mrf.mxu0
  %v201 = vadd.f32 %v157, %v200
  %202 = vmatmul.bf16.gmra.mxu0 %v179
  %v203 = vpop.f32.mrf.mxu0
  %v204 = vadd.f32 %v157, %v203
  %v205 = vpop.f32.mrf.mxu0
  %v206 = vadd.f32 %v157, %v205
  %207 = vmatmul.bf16.gmra.mxu0 %v182
  %v208 = vpop.f32.mrf.mxu0
  %v209 = vadd.f32 %v157, %v208
  %v210 = vpop.f32.mrf.mxu0
  %v211 = vadd.f32 %v157, %v210
  %212 = vdwg.mxu0
  %vm213 = vcmp.ge.f32.partialorder %v194, 0.0
  %vm214 = vcmp.ge.f32.partialorder %v196, 0.0
  %vm215 = vcmp.ge.f32.partialorder %v199, 0.0
  %vm216 = vcmp.ge.f32.partialorder %v201, 0.0
  %vm217 = vcmp.ge.f32.partialorder %v204, 0.0
  %vm218 = vcmp.ge.f32.partialorder %v206, 0.0
  %vm219 = vcmp.ge.f32.partialorder %v209, 0.0
  %vm220 = vcmp.ge.f32.partialorder %v211, 0.0
  %v221 = vmul.f32 %v194, 0.2
  %v222 = vmul.f32 %v196, 0.2
  %v223 = vmul.f32 %v199, 0.2
  %v224 = vmul.f32 %v201, 0.2
  %v225 = vmul.f32 %v204, 0.2
  %v226 = vmul.f32 %v206, 0.2
  %v227 = vmul.f32 %v209, 0.2
  %v228 = vmul.f32 %v211, 0.2
  %v229 = vsel %vm213, %v194, %v221
  %v230 = vsel %vm214, %v196, %v222
  %v231 = vsel %vm215, %v199, %v223
  %v232 = vsel %vm216, %v201, %v224
  %v233 = vsel %vm217, %v204, %v225
  %v234 = vsel %vm218, %v206, %v226
  %v235 = vsel %vm219, %v209, %v227
  %v236 = vsel %vm220, %v211, %v228
  %v237 = vpack.c.bf16 %v230, %v229
  %v238 = vpack.c.bf16 %v232, %v231
  %v239 = vpack.c.bf16 %v234, %v233
  %v240 = vpack.c.bf16 %v236, %v235
  %v241 = vld [vmem:[%s5] sm:$0xf]
  %v242 = vld [vmem:[%s5 + $0x4] sm:$0xf]
  %v243 = vld [vmem:[%s5 + $0x8] sm:$0xf]
  %v244 = vld [vmem:[%s5 + $0xc] sm:$0xf]
  %v245 = vld [vmem:[%s6] sm:$0x1]
  %v247 = vperm.slane %v245, 0
  %v253 = vunpack.c.l.b16 %v241
  %v254 = vunpack.c.l.b16 %v242
  %v255 = vunpack.c.l.b16 %v243
  %v256 = vunpack.c.l.b16 %v244
  %v257 = vpack.c.b16 %v254, %v253
  %v258 = vpack.c.b16 %v256, %v255
  %v262 = vsel %vm171, %v237, 0
  %v265 = vsel %vm171, %v238, 0
  %v268 = vsel %vm171, %v239, 0
  %v271 = vsel %vm171, %v240, 0
  %273 = vmatpush.bf16.msra.mxu0 0
  %274 = vmatpush.bf16.msra.mxu0 0
  %275 = vmatpush.bf16.msra.mxu0 0
  %276 = vmatpush.bf16.msra.mxu0 0
  %277 = vmatpush.bf16.msra.mxu0 0
  %278 = vmatpush.bf16.msra.mxu0 0
  %279 = vmatpush.bf16.msra.mxu0 %v258
  %280 = vmatpush.bf16.msra.mxu0 %v257
  %281 = vmatmul.bf16.gmra.mxu0 %v262
  %v282 = vpop.f32.mrf.mxu0
  %v283 = vadd.f32 %v247, %v282
  %v284 = vpop.f32.mrf.mxu0
  %v285 = vadd.f32 %v247, %v284
  %286 = vmatmul.bf16.gmra.mxu0 %v265
  %v287 = vpop.f32.mrf.mxu0
  %v288 = vadd.f32 %v247, %v287
  %v289 = vpop.f32.mrf.mxu0
  %v290 = vadd.f32 %v247, %v289
  %291 = vmatmul.bf16.gmra.mxu0 %v268
  %v292 = vpop.f32.mrf.mxu0
  %v293 = vadd.f32 %v247, %v292
  %v294 = vpop.f32.mrf.mxu0
  %v295 = vadd.f32 %v247, %v294
  %296 = vmatmul.bf16.gmra.mxu0 %v271
  %v297 = vpop.f32.mrf.mxu0
  %v298 = vadd.f32 %v247, %v297
  %v299 = vpop.f32.mrf.mxu0
  %v300 = vadd.f32 %v247, %v299
  %301 = vdwg.mxu0
  %vm302 = vcmp.ge.f32.partialorder %v283, 0.0
  %vm303 = vcmp.ge.f32.partialorder %v285, 0.0
  %vm304 = vcmp.ge.f32.partialorder %v288, 0.0
  %vm305 = vcmp.ge.f32.partialorder %v290, 0.0
  %vm306 = vcmp.ge.f32.partialorder %v293, 0.0
  %vm307 = vcmp.ge.f32.partialorder %v295, 0.0
  %vm308 = vcmp.ge.f32.partialorder %v298, 0.0
  %vm309 = vcmp.ge.f32.partialorder %v300, 0.0
  %v310 = vmul.f32 %v283, 0.2
  %v311 = vmul.f32 %v285, 0.2
  %v312 = vmul.f32 %v288, 0.2
  %v313 = vmul.f32 %v290, 0.2
  %v314 = vmul.f32 %v293, 0.2
  %v315 = vmul.f32 %v295, 0.2
  %v316 = vmul.f32 %v298, 0.2
  %v317 = vmul.f32 %v300, 0.2
  %v318 = vsel %vm302, %v283, %v310
  %v319 = vsel %vm303, %v285, %v311
  %v320 = vsel %vm304, %v288, %v312
  %v321 = vsel %vm305, %v290, %v313
  %v322 = vsel %vm306, %v293, %v314
  %v323 = vsel %vm307, %v295, %v315
  %v324 = vsel %vm308, %v298, %v316
  %v325 = vsel %vm309, %v300, %v317
  %v326 = vpack.c.bf16 %v319, %v318
  %v327 = vpack.c.bf16 %v321, %v320
  %v328 = vpack.c.bf16 %v323, %v322
  %v329 = vpack.c.bf16 %v325, %v324
  %v330 = vld [vmem:[%s7] sm:$0xf]
  %v331 = vld [vmem:[%s7 + $0x4] sm:$0xf]
  %v332 = vld [vmem:[%s7 + $0x8] sm:$0xf]
  %v333 = vld [vmem:[%s7 + $0xc] sm:$0xf]
  %v334 = vld [vmem:[%s7 + $0x10] sm:$0xf]
  %v335 = vld [vmem:[%s7 + $0x14] sm:$0xf]
  %v336 = vld [vmem:[%s7 + $0x18] sm:$0xf]
  %v337 = vld [vmem:[%s7 + $0x1c] sm:$0xf]
  %v338 = vld [vmem:[%s8] sm:$0x1]
  %v340 = vperm.slane %v338, 0
  %v350 = vunpack.c.l.b16 %v330
  %v351 = vunpack.c.l.b16 %v331
  %v352 = vunpack.c.l.b16 %v332
  %v353 = vunpack.c.l.b16 %v333
  %v354 = vunpack.c.l.b16 %v334
  %v355 = vunpack.c.l.b16 %v335
  %v356 = vunpack.c.l.b16 %v336
  %v357 = vunpack.c.l.b16 %v337
  %v358 = vpack.c.b16 %v351, %v350
  %v359 = vpack.c.b16 %v353, %v352
  %v360 = vpack.c.b16 %v355, %v354
  %v361 = vpack.c.b16 %v357, %v356
  %vm366 = vcmask 523264
  %v368 = vsel %vm366, %v326, 0
  %v371 = vsel %vm366, %v327, 0
  %v374 = vsel %vm366, %v328, 0
  %v377 = vsel %vm366, %v329, 0
  %379 = vmatpush.bf16.msra.mxu0 0
  %380 = vmatpush.bf16.msra.mxu0 0
  %381 = vmatpush.bf16.msra.mxu0 0
  %382 = vmatpush.bf16.msra.mxu0 0
  %383 = vmatpush.bf16.msra.mxu0 %v361
  %384 = vmatpush.bf16.msra.mxu0 %v360
  %385 = vmatpush.bf16.msra.mxu0 %v359
  %386 = vmatpush.bf16.msra.mxu0 %v358
  %387 = vmatmul.bf16.gmra.mxu0 %v368
  %v388 = vpop.f32.mrf.mxu0
  %v389 = vadd.f32 %v340, %v388
  %v390 = vpop.f32.mrf.mxu0
  %v391 = vadd.f32 %v340, %v390
  %392 = vmatmul.bf16.gmra.mxu0 %v371
  %v393 = vpop.f32.mrf.mxu0
  %v394 = vadd.f32 %v340, %v393
  %v395 = vpop.f32.mrf.mxu0
  %v396 = vadd.f32 %v340, %v395
  %397 = vmatmul.bf16.gmra.mxu0 %v374
  %v398 = vpop.f32.mrf.mxu0
  %v399 = vadd.f32 %v340, %v398
  %v400 = vpop.f32.mrf.mxu0
  %v401 = vadd.f32 %v340, %v400
  %402 = vmatmul.bf16.gmra.mxu0 %v377
  %v403 = vpop.f32.mrf.mxu0
  %v404 = vadd.f32 %v340, %v403
  %v405 = vpop.f32.mrf.mxu0
  %v406 = vadd.f32 %v340, %v405
  %407 = vdwg.mxu0
  %vm408 = vcmp.ge.f32.partialorder %v389, 0.0
  %vm409 = vcmp.ge.f32.partialorder %v391, 0.0
  %vm410 = vcmp.ge.f32.partialorder %v394, 0.0
  %vm411 = vcmp.ge.f32.partialorder %v396, 0.0
  %vm412 = vcmp.ge.f32.partialorder %v399, 0.0
  %vm413 = vcmp.ge.f32.partialorder %v401, 0.0
  %vm414 = vcmp.ge.f32.partialorder %v404, 0.0
  %vm415 = vcmp.ge.f32.partialorder %v406, 0.0
  %v416 = vmul.f32 %v389, 0.2
  %v417 = vmul.f32 %v391, 0.2
  %v418 = vmul.f32 %v394, 0.2
  %v419 = vmul.f32 %v396, 0.2
  %v420 = vmul.f32 %v399, 0.2
  %v421 = vmul.f32 %v401, 0.2
  %v422 = vmul.f32 %v404, 0.2
  %v423 = vmul.f32 %v406, 0.2
  %v424 = vsel %vm408, %v389, %v416
  %v425 = vsel %vm409, %v391, %v417
  %v426 = vsel %vm410, %v394, %v418
  %v427 = vsel %vm411, %v396, %v419
  %v428 = vsel %vm412, %v399, %v420
  %v429 = vsel %vm413, %v401, %v421
  %v430 = vsel %vm414, %v404, %v422
  %v431 = vsel %vm415, %v406, %v423
  %v432 = vpack.c.bf16 %v425, %v424
  %v433 = vpack.c.bf16 %v427, %v426
  %v434 = vpack.c.bf16 %v429, %v428
  %v435 = vpack.c.bf16 %v431, %v430
  %v436 = vld [vmem:[%s9] sm:$0xf]
  %v437 = vld [vmem:[%s10] sm:$0x1]
  %v439 = vperm.slane %v437, 0
  %vm441 = vcmask 64512
  %v443 = vsel %vm441, %v432, 0
  %v446 = vsel %vm441, %v433, 0
  %v449 = vsel %vm441, %v434, 0
  %v452 = vsel %vm441, %v435, 0
  %vm454 = vcmask 1043456
  %v456 = vsel %vm454, %v436, 0
  %458 = vmatpush.bf16.msra.mxu0 0
  %459 = vmatpush.bf16.msra.mxu0 0
  %460 = vmatpush.bf16.msra.mxu0 0
  %461 = vmatpush.bf16.msra.mxu0 0
  %462 = vmatpush.bf16.msra.mxu0 0
  %463 = vmatpush.bf16.msra.mxu0 0
  %464 = vmatpush.bf16.msra.mxu0 0
  %465 = vmatpush.bf16.msra.mxu0 %v456
  %466 = vmatmul.bf16.gmra.mxu0 %v443
  %v467 = vpop.f32.mrf.mxu0
  %v468 = vadd.f32 %v439, %v467
  %v469 = vpop.f32.mrf.mxu0
  %v470 = vadd.f32 %v439, %v469
  %471 = vmatmul.bf16.gmra.mxu0 %v446
  %v472 = vpop.f32.mrf.mxu0
  %v473 = vadd.f32 %v439, %v472
  %v474 = vpop.f32.mrf.mxu0
  %v475 = vadd.f32 %v439, %v474
  %476 = vmatmul.bf16.gmra.mxu0 %v449
  %v477 = vpop.f32.mrf.mxu0
  %v478 = vadd.f32 %v439, %v477
  %v479 = vpop.f32.mrf.mxu0
  %v480 = vadd.f32 %v439, %v479
  %481 = vmatmul.bf16.gmra.mxu0 %v452
  %v482 = vpop.f32.mrf.mxu0
  %v483 = vadd.f32 %v439, %v482
  %v484 = vpop.f32.mrf.mxu0
  %v485 = vadd.f32 %v439, %v484
  %486 = vdwg.mxu0
  %v487 = vpack.c.bf16 %v468, %v468
  %v488 = vpack.c.bf16 %v470, %v470
  %v489 = vpack.c.bf16 %v473, %v473
  %v490 = vpack.c.bf16 %v475, %v475
  %v491 = vpack.c.bf16 %v478, %v478
  %v492 = vpack.c.bf16 %v480, %v480
  %v493 = vpack.c.bf16 %v483, %v483
  %v494 = vpack.c.bf16 %v485, %v485
  %vm495 = vcmask 191488
  %496 = vst.msk [vmem:[%s11] sm:$0xf] %vm495, %v487
  %497 = vst.msk [vmem:[%s11 + $0x4] sm:$0xf] %vm495, %v488
  %498 = vst.msk [vmem:[%s11 + $0x8] sm:$0xf] %vm495, %v489
  %499 = vst.msk [vmem:[%s11 + $0xc] sm:$0xf] %vm495, %v490
  %500 = vst.msk [vmem:[%s11 + $0x10] sm:$0xf] %vm495, %v491
  %501 = vst.msk [vmem:[%s11 + $0x14] sm:$0xf] %vm495, %v492
  %502 = vst.msk [vmem:[%s11 + $0x18] sm:$0xf] %vm495, %v493
  %503 = vst.msk [vmem:[%s11 + $0x1c] sm:$0xf] %vm495, %v494
  // Predicated region
  $region46: #{tpu_custom_call.1} parent=0 // pred_check
    _
  $region47: #{tpu_custom_call.1} parent=0 // pred_check_branch
    %505 = sbr.rel (0) target = $region49
  $region48: #{tpu_custom_call.1} parent=0 // pred_region
    _
  $region49: #{tpu_custom_call.1} parent=0 // pred_fallthru
    _
  // Predicated region
  $region50: #{tpu_custom_call.1} parent=0 // pred_check
    _
  $region51: #{tpu_custom_call.1} parent=0 // pred_check_branch
    %507 = sbr.rel (0) target = $region53
  $region52: #{tpu_custom_call.1} parent=0 // pred_region
    _
  $region53: #{tpu_custom_call.1} parent=0 // pred_fallthru
    _

</llo_original>
